<compile_context>
chip_gen: v7x
topology: tpu7x:2x2x1
jax: 0.10.0
libtpu: 0.0.40
codegen_flags: <defaults>
</compile_context>

<pallas_src>
import functools
import math

import jax
import jax.numpy as jnp
import numpy as np
from jax import lax
from jax.experimental import pallas as pl
from jax.experimental.pallas import tpu as pltpu

_GROUP = 8     # scan unroll group = one f32 sublane tile
_LANE = 128    # TPU lane width


def _round_up(x, m):
    return -(-x // m) * m


def _mamba_kernel(h_ref, w_in_hbm, conv_w_ref, conv_b_ref, w_x_ref, w_dt_ref,
                  dt_bias_ref, a_ref, d_ref, w_out_hbm,
                  out_ref,
                  w_in_s, w_out_s, copy_sem,
                  hstate_s, tail_s, delta_s, dx_s, b_s, c_s, y_s,
                  *, tl, d_inner, d_state, d_conv, dt_slab, state_slab):
    chunk = pl.program_id(1)

    # --- once per sequence: reset carried state and (re)load the big weights ---
    # (guarded on chunk==0 only, so it is also correct if the "parallel" batch
    #  axis is sharded across TensorCores)
    @pl.when(chunk == 0)
    def _():
        hstate_s[...] = jnp.zeros_like(hstate_s)
        tail_s[...] = jnp.zeros_like(tail_s)
        cp_in = pltpu.make_async_copy(w_in_hbm, w_in_s, copy_sem.at[0])
        cp_out = pltpu.make_async_copy(w_out_hbm, w_out_s, copy_sem.at[1])
        cp_in.start()
        cp_out.start()
        cp_in.wait()
        cp_out.wait()

    hs = h_ref[0]                                                    # (tl, d_model) bf16

    # ---- in_proj: bf16 MXU matmul, f32 accumulation ----
    xz = jnp.dot(hs, w_in_s[...], preferred_element_type=jnp.float32)
    x = xz[:, :d_inner]                                              # (tl, d_inner)
    z = xz[:, d_inner:]                                              # (tl, d_inner)

    # ---- depthwise causal conv1d with carried (d_conv-1) tail, then SiLU ----
    cw = conv_w_ref[...]                                             # (d_conv, d_inner)
    x_cat = jnp.concatenate([tail_s[...], x], axis=0)                # (tl+d_conv-1, d_inner)
    tail_s[...] = x_cat[tl:, :]                                      # tail for next chunk
    conv = jnp.zeros((tl, d_inner), jnp.float32)
    for w in range(d_conv):                                          # static, tiny
        conv = conv + x_cat[w:w + tl, :] * cw[w:w + 1, :]
    conv = conv + conv_b_ref[...]
    x_conv = conv * jax.nn.sigmoid(conv)                             # SiLU, f32

    # ---- fused x_proj: [dt | B | C] with 128-lane-aligned slabs ----
    dbc = jnp.dot(x_conv.astype(jnp.bfloat16), w_x_ref[...],
                  preferred_element_type=jnp.float32)                # (tl, dt_slab+2*state_slab)
    dt_low = dbc[:, :dt_slab]                                        # lane-aligned slab
    b_s[...] = dbc[:, dt_slab:dt_slab + d_state]                     # (tl, d_state)
    c_s[...] = dbc[:, dt_slab + state_slab:dt_slab + state_slab + d_state]

    # ---- dt_proj (zero-padded rows beyond dt_rank) + softplus ----
    delta = jnp.dot(dt_low.astype(jnp.bfloat16), w_dt_ref[...],
                    preferred_element_type=jnp.float32)              # (tl, d_inner)
    delta = jax.nn.softplus(delta + dt_bias_ref[...])
    delta_s[...] = delta
    dx_s[...] = delta * x_conv

    # ---- sequential selective scan, 8 steps per group, readout fused ----
    a = a_ref[...]                                                   # (d_state, d_inner)

    def group(g, state):
        start = pl.multiple_of(g * _GROUP, _GROUP)
        d_grp = delta_s[pl.ds(start, _GROUP), :]                     # (8, d_inner)
        dx_grp = dx_s[pl.ds(start, _GROUP), :]                       # (8, d_inner)
        b_grp = b_s[pl.ds(start, _GROUP), :]                         # (8, d_state)
        c_grp = c_s[pl.ds(start, _GROUP), :]                         # (8, d_state)
        # Group-local coefficients (bounded to 8 steps, never chunk-sized).
        dA = jnp.exp(d_grp[:, None, :] * a[None, :, :])              # (8, N, d_inner)
        dBx = b_grp[:, :, None] * dx_grp[:, None, :]                 # (8, N, d_inner)
        ys = []
        for j in range(_GROUP):                                      # static unroll
            state = dA[j] * state + dBx[j]                           # (N, d_inner), VPU
            ys.append(jnp.dot(c_grp[j:j + 1, :], state,              # (1, d_inner), MXU
                              preferred_element_type=jnp.float32))
        y_s[pl.ds(start, _GROUP), :] = jnp.concatenate(ys, axis=0)   # dense 8-row store
        return state

    state = lax.fori_loop(0, tl // _GROUP, group, hstate_s[...])
    hstate_s[...] = state                                            # carry to next chunk

    # ---- skip connection, SiLU gate, out_proj ----
    y = y_s[...] + x_conv * d_ref[...]
    y = y * (z * jax.nn.sigmoid(z))                                  # y * silu(z)
    out_ref[0] = jnp.dot(y.astype(jnp.bfloat16), w_out_s[...],
                         preferred_element_type=jnp.float32)         # (tl, d_model)


def _default_vmem_limit_bytes():
    """Generation-aware scoped-VMEM budget (leave headroom for the compiler)."""
    try:
        kind = jax.devices()[0].device_kind.lower()
    except Exception:
        kind = ""
    # v4/v5/v6-class TensorCores have 128 MiB VMEM; unknown / newer parts are
    # treated as 64 MiB parts and get a conservative budget.
    if any(tag in kind for tag in ("v4", "v5", "v6", "trillium")):
        return 100 << 20
    return 48 << 20


def _pick_chunk(L, max_chunk, *, d_model, d_inner, d_state, vmem_limit_bytes):
    """Multiple-of-16 chunk length that fits a simple VMEM budget."""
    tl = min(_round_up(max(L, 16), 16), _round_up(max_chunk, 16))
    fixed = (d_model * 2 * d_inner * 2                 # resident w_in (bf16)
             + d_inner * d_model * 2                   # resident w_out (bf16)
             + (d_state + _GROUP) * d_inner * 4        # carried state + conv tail
             + 2 * _GROUP * d_state * d_inner * 4)     # per-group dA/dBx temporaries
    per_row = ((3 * d_inner + 2 * max(d_state, _LANE)) * 4   # delta/dx/y + B/C scratch
               + 2 * d_model * 2                             # hidden block bf16 (x2 bufs)
               + 2 * d_model * 4)                            # output block f32 (x2 bufs)
    budget = int(0.55 * vmem_limit_bytes) - fixed
    if budget > per_row * 16:
        tl = min(tl, max(16, (budget // per_row) // 16 * 16))
    else:
        tl = 16
    return tl


def mamba_forward(hidden, params, *, d_state, d_conv, max_chunk=None,
                  vmem_limit_bytes=None):
    Bsz, L, D = hidden.shape
    d_inner = params["w_in"].shape[1] // 2
    dt_slab = params["w_dt"].shape[0]
    state_slab = (params["w_x"].shape[1] - dt_slab) // 2

    if vmem_limit_bytes is None:
        vmem_limit_bytes = _default_vmem_limit_bytes()
    if max_chunk is None:
        max_chunk = 512 if vmem_limit_bytes >= (96 << 20) else 256

    tl = _pick_chunk(L, max_chunk, d_model=D, d_inner=d_inner, d_state=d_state,
                     vmem_limit_bytes=vmem_limit_bytes)
    L_pad = _round_up(L, tl)
    nchunks = L_pad // tl

    # Stream activations as bf16; pad L (with zeros, causally harmless at the end).
    hid = hidden.astype(jnp.bfloat16)
    if L_pad != L:
        hid = jnp.pad(hid, ((0, 0), (0, L_pad - L), (0, 0)))

    kernel = functools.partial(
        _mamba_kernel, tl=tl, d_inner=d_inner, d_state=d_state, d_conv=d_conv,
        dt_slab=dt_slab, state_slab=state_slab)

    small_weights = (params["conv_w"], params["conv_b"], params["w_x"],
                     params["w_dt"], params["dt_bias"], params["A_t"], params["D"])

    def resident(arr):
        zeros = (0,) * arr.ndim
        return pl.BlockSpec(arr.shape, lambda b, c, _z=zeros: _z)

    in_specs = [pl.BlockSpec((1, tl, D), lambda b, c: (b, c, 0)),    # hidden (streamed)
                pl.BlockSpec(memory_space=pl.ANY)]                   # w_in stays in HBM
    in_specs += [resident(a) for a in small_weights]
    in_specs += [pl.BlockSpec(memory_space=pl.ANY)]                  # w_out stays in HBM
    out_specs = pl.BlockSpec((1, tl, D), lambda b, c: (b, c, 0))

    # TODO(synk): for very large d_model, stream w_in/w_out tiles with
    # pltpu.emit_pipeline instead of keeping them fully resident; on 2-TC
    # parts a d_inner channel split would add another parallel axis.
    out = pl.pallas_call(
        kernel,
        out_shape=jax.ShapeDtypeStruct((Bsz, L_pad, D), jnp.float32),
        grid_spec=pltpu.PrefetchScalarGridSpec(
            num_scalar_prefetch=0,
            grid=(Bsz, nchunks),
            in_specs=in_specs,
            out_specs=out_specs,
            scratch_shapes=[
                pltpu.VMEM(params["w_in"].shape, jnp.bfloat16),      # resident w_in
                pltpu.VMEM(params["w_out"].shape, jnp.bfloat16),     # resident w_out
                pltpu.SemaphoreType.DMA((2,)),                       # weight-copy sems
                pltpu.VMEM((d_state, d_inner), jnp.float32),         # carried SSM state
                pltpu.VMEM((d_conv - 1, d_inner), jnp.float32),      # carried conv tail
                pltpu.VMEM((tl, d_inner), jnp.float32),              # delta
                pltpu.VMEM((tl, d_inner), jnp.float32),              # delta * x
                pltpu.VMEM((tl, d_state), jnp.float32),              # B
                pltpu.VMEM((tl, d_state), jnp.float32),              # C
                pltpu.VMEM((tl, d_inner), jnp.float32),              # per-step readout y
            ],
        ),
        compiler_params=pltpu.CompilerParams(
            dimension_semantics=("parallel", "arbitrary"),
            vmem_limit_bytes=vmem_limit_bytes),
    )(hid, params["w_in"], *small_weights, params["w_out"])

    return out[:, :L, :] if L_pad != L else out


def init_params(key, d_model, d_state=16, d_conv=4, expand=2,
                dt_min=1e-3, dt_max=0.1, dt_init_floor=1e-4):
    """Deterministic synthetic init mirroring the PyTorch module's shapes."""
    d_inner = int(expand * d_model)
    dt_rank = math.ceil(d_model / 16)
    dt_slab = _round_up(dt_rank, _LANE)
    state_slab = _round_up(d_state, _LANE)
    ks = jax.random.split(key, 7)

    def linear_w(k, out_f, in_f):
        bound = 1.0 / math.sqrt(in_f)
        return jax.random.uniform(k, (out_f, in_f), jnp.float32, -bound, bound)

    in_proj_w = linear_w(ks[0], 2 * d_inner, d_model)                # (2*d_inner, d_model)
    cbound = 1.0 / math.sqrt(d_conv)
    conv_w = jax.random.uniform(ks[1], (d_inner, d_conv), jnp.float32, -cbound, cbound)
    conv_b = jax.random.uniform(ks[2], (d_inner,), jnp.float32, -cbound, cbound)
    x_proj_w = linear_w(ks[3], dt_rank + 2 * d_state, d_inner)       # (dt_rank+2N, d_inner)

    dt_init_std = dt_rank ** (-0.5)
    dt_proj_w = jax.random.uniform(ks[4], (d_inner, dt_rank), jnp.float32,
                                   -dt_init_std, dt_init_std)
    dt = jnp.exp(jax.random.uniform(ks[5], (d_inner,), jnp.float32)
                 * (math.log(dt_max) - math.log(dt_min)) + math.log(dt_min))
    dt = jnp.maximum(dt, dt_init_floor)
    inv_dt = dt + jnp.log(-jnp.expm1(-dt))                           # dt_proj.bias

    # A = -exp(A_log), A_log = log(arange(1, N+1)) broadcast over d_inner.
    A = -jnp.broadcast_to(jnp.arange(1, d_state + 1, dtype=jnp.float32)[None, :],
                          (d_inner, d_state))
    Dvec = jnp.ones((d_inner,), jnp.float32)
    out_proj_w = linear_w(ks[6], d_model, d_inner)                   # (d_model, d_inner)

    # x_proj transposed + column-padded so dt / B / C start on 128-lane slabs.
    w_x = jnp.zeros((d_inner, dt_slab + 2 * state_slab), jnp.float32)
    w_x = w_x.at[:, :dt_rank].set(x_proj_w[:dt_rank].T)
    w_x = w_x.at[:, dt_slab:dt_slab + d_state].set(x_proj_w[dt_rank:dt_rank + d_state].T)
    w_x = w_x.at[:, dt_slab + state_slab:dt_slab + state_slab + d_state].set(
        x_proj_w[dt_rank + d_state:].T)
    # dt_proj transposed, input dim zero-padded dt_rank -> dt_slab.
    w_dt = jnp.zeros((dt_slab, d_inner), jnp.float32)
    w_dt = w_dt.at[:dt_rank, :].set(dt_proj_w.T)

    return {
        # bf16 weights for the MXU matmuls (f32 accumulation in-kernel)
        "w_in":    jnp.asarray(in_proj_w.T, jnp.bfloat16),           # (d_model, 2*d_inner)
        "w_x":     jnp.asarray(w_x, jnp.bfloat16),                   # (d_inner, dt_slab+2*128)
        "w_dt":    jnp.asarray(w_dt, jnp.bfloat16),                  # (dt_slab, d_inner)
        "w_out":   jnp.asarray(out_proj_w.T, jnp.bfloat16),          # (d_inner, d_model)
        # f32 params for the numerically sensitive conv / scan path
        "conv_w":  jnp.asarray(conv_w.T),                            # (d_conv, d_inner)
        "conv_b":  conv_b[None, :],                                  # (1, d_inner)
        "dt_bias": inv_dt[None, :],                                  # (1, d_inner)
        "A_t":     jnp.asarray(A.T),                                 # (d_state, d_inner)
        "D":       Dvec[None, :],                                    # (1, d_inner)
    }


def mamba_reference(hidden, params, *, d_state, d_conv):
    """Pure-JAX reference of the same forward math (mirrors the bf16 matmuls)."""
    Bsz, L, Dm = hidden.shape
    d_inner = params["w_in"].shape[1] // 2
    dt_slab = params["w_dt"].shape[0]
    state_slab = (params["w_x"].shape[1] - dt_slab) // 2

    h2 = hidden.astype(jnp.bfloat16).reshape(Bsz * L, Dm)
    xz = jnp.dot(h2, params["w_in"], preferred_element_type=jnp.float32)
    xz = xz.reshape(Bsz, L, 2 * d_inner)
    x, z = xz[..., :d_inner], xz[..., d_inner:]

    x_pad = jnp.concatenate(
        [jnp.zeros((Bsz, d_conv - 1, d_inner), jnp.float32), x], axis=1)
    conv = jnp.zeros_like(x)
    cw = params["conv_w"]
    for w in range(d_conv):
        conv = conv + x_pad[:, w:w + L, :] * cw[w][None, None, :]
    conv = conv + params["conv_b"][None]
    xc = conv * jax.nn.sigmoid(conv)

    dbc = jnp.dot(xc.reshape(Bsz * L, d_inner).astype(jnp.bfloat16), params["w_x"],
                  preferred_element_type=jnp.float32).reshape(Bsz, L, -1)
    dt_low = dbc[..., :dt_slab]
    Bm = dbc[..., dt_slab:dt_slab + d_state]
    Cm = dbc[..., dt_slab + state_slab:dt_slab + state_slab + d_state]
    delta = jnp.dot(dt_low.reshape(Bsz * L, dt_slab).astype(jnp.bfloat16), params["w_dt"],
                    preferred_element_type=jnp.float32).reshape(Bsz, L, d_inner)
    delta = jax.nn.softplus(delta + params["dt_bias"][None])

    A = params["A_t"]                                                # (d_state, d_inner)

    def step(h, inp):
        d_l, x_l, b_l, c_l = inp
        dA = jnp.exp(d_l[:, None, :] * A[None])
        h = dA * h + (d_l * x_l)[:, None, :] * b_l[:, :, None]
        y = jnp.sum(h * c_l[:, :, None], axis=1)
        return h, y

    h0 = jnp.zeros((Bsz, d_state, d_inner), jnp.float32)
    inputs = (jnp.swapaxes(delta, 0, 1), jnp.swapaxes(xc, 0, 1),
              jnp.swapaxes(Bm, 0, 1), jnp.swapaxes(Cm, 0, 1))
    _, ys = lax.scan(step, h0, inputs)
    y = jnp.swapaxes(ys, 0, 1)
    y = y + xc * params["D"][None]
    y = y * (z * jax.nn.sigmoid(z))
    out = jnp.dot(y.reshape(Bsz * L, d_inner).astype(jnp.bfloat16), params["w_out"],
                  preferred_element_type=jnp.float32).reshape(Bsz, L, Dm)
    return out


if __name__ == "__main__":
    # small shapes consistent with the module: d_model=32 -> d_inner=64, dt_rank=2
    d_model, d_state, d_conv, expand = 32, 16, 4, 2
    batch, seqlen = 2, 32

    key = jax.random.PRNGKey(0)
    pkey, xkey = jax.random.split(key)
    params = init_params(pkey, d_model, d_state=d_state, d_conv=d_conv, expand=expand)
    hidden = jax.random.normal(xkey, (batch, seqlen, d_model), jnp.float32)

    # single-chunk run and a 2-chunk run (exercises the carried state / conv tail)
    out_full = mamba_forward(hidden, params, d_state=d_state, d_conv=d_conv)
    out_chunked = mamba_forward(hidden, params, d_state=d_state, d_conv=d_conv,
                                max_chunk=16)
    out_full, out_chunked = jax.block_until_ready((out_full, out_chunked))

    ref = mamba_reference(hidden, params, d_state=d_state, d_conv=d_conv)
    np.testing.assert_allclose(np.asarray(out_full), np.asarray(ref),
                               rtol=1e-2, atol=1e-2)
    np.testing.assert_allclose(np.asarray(out_chunked), np.asarray(ref),
                               rtol=1e-2, atol=1e-2)
    # TODO(synk): decode step()/cache path, cu_seqlens, mask, jamba_norm and
    # gmu_save branches are not implemented (default fused forward path only).
    print("KERNEL_OK")
</pallas_src>

<mosaic_0001>
module attributes {stable_mosaic.version = 11 : i64} {
  func.func @_mamba_kernel(%arg0: i32, %arg1: i32, %arg2: memref<1x32x32xbf16, #tpu.memory_space<vmem>>, %arg3: memref<32x128xbf16, #tpu.memory_space<any>>, %arg4: memref<4x64xf32, #tpu.memory_space<vmem>>, %arg5: memref<1x64xf32, #tpu.memory_space<vmem>>, %arg6: memref<64x384xbf16, #tpu.memory_space<vmem>>, %arg7: memref<128x64xbf16, #tpu.memory_space<vmem>>, %arg8: memref<1x64xf32, #tpu.memory_space<vmem>>, %arg9: memref<16x64xf32, #tpu.memory_space<vmem>>, %arg10: memref<1x64xf32, #tpu.memory_space<vmem>>, %arg11: memref<64x32xbf16, #tpu.memory_space<any>>, %arg12: memref<1x32x32xf32, #tpu.memory_space<vmem>>, %arg13: memref<32x128xbf16, #tpu.memory_space<vmem>>, %arg14: memref<64x32xbf16, #tpu.memory_space<vmem>>, %arg15: memref<2x!tpu.dma_semaphore, #tpu.memory_space<semaphore_mem>>, %arg16: memref<16x64xf32, #tpu.memory_space<vmem>>, %arg17: memref<3x64xf32, #tpu.memory_space<vmem>>, %arg18: memref<32x64xf32, #tpu.memory_space<vmem>>, %arg19: memref<32x64xf32, #tpu.memory_space<vmem>>, %arg20: memref<32x16xf32, #tpu.memory_space<vmem>>, %arg21: memref<32x16xf32, #tpu.memory_space<vmem>>, %arg22: memref<32x64xf32, #tpu.memory_space<vmem>>) attributes {dimension_semantics = [#tpu.dimension_semantics<parallel>, #tpu.dimension_semantics<arbitrary>], iteration_bounds = array<i64: 2, 1>, scalar_prefetch = 0 : i64, scratch_operands = 10 : i64, tpu.core_type = #tpu.core_type<tc>, window_params = [{transform_indices = @transform_0, window_bounds = array<i64: 1, 32, 32>}, {}, {pipeline_mode = #tpu.pipeline_mode<synchronous>, transform_indices = @transform_2, window_bounds = array<i64: 4, 64>}, {pipeline_mode = #tpu.pipeline_mode<synchronous>, transform_indices = @transform_3, window_bounds = array<i64: 1, 64>}, {pipeline_mode = #tpu.pipeline_mode<synchronous>, transform_indices = @transform_4, window_bounds = array<i64: 64, 384>}, {pipeline_mode = #tpu.pipeline_mode<synchronous>, transform_indices = @transform_5, window_bounds = array<i64: 128, 64>}, {pipeline_mode = #tpu.pipeline_mode<synchronous>, transform_indices = @transform_6, window_bounds = array<i64: 1, 64>}, {pipeline_mode = #tpu.pipeline_mode<synchronous>, transform_indices = @transform_7, window_bounds = array<i64: 16, 64>}, {pipeline_mode = #tpu.pipeline_mode<synchronous>, transform_indices = @transform_8, window_bounds = array<i64: 1, 64>}, {}, {transform_indices = @transform_10, window_bounds = array<i64: 1, 32, 32>}]} {
    %c0_i32 = arith.constant 0 : i32
    %0 = arith.cmpi eq, %arg1, %c0_i32 : i32
    %1 = arith.extui %0 : i1 to i32
    %c0_i32_0 = arith.constant 0 : i32
    %2 = arith.cmpi ne, %1, %c0_i32_0 : i32
    scf.if %2 {
      %cst_52 = arith.constant 0.000000e+00 : f32
      %98 = vector.broadcast %cst_52 : f32 to vector<16x64xf32>
      %c0_53 = arith.constant 0 : index
      %c0_54 = arith.constant 0 : index
      %99 = vector.load %arg16[%c0_53, %c0_54] : memref<16x64xf32, #tpu.memory_space<vmem>>, vector<16x64xf32>
      tpu.vector_store %arg16[%c0_53, %c0_54], %98 {strides = array<i32>} : memref<16x64xf32, #tpu.memory_space<vmem>>, vector<16x64xf32>,
      %cst_55 = arith.constant 0.000000e+00 : f32
      %100 = vector.broadcast %cst_55 : f32 to vector<3x64xf32>
      %c0_56 = arith.constant 0 : index
      %c0_57 = arith.constant 0 : index
      %101 = vector.load %arg17[%c0_56, %c0_57] : memref<3x64xf32, #tpu.memory_space<vmem>>, vector<3x64xf32>
      tpu.vector_store %arg17[%c0_56, %c0_57], %100 {strides = array<i32>} : memref<3x64xf32, #tpu.memory_space<vmem>>, vector<3x64xf32>,
      %c0_i32_58 = arith.constant 0 : i32
      %102 = tpu.memref_slice %arg15[%c0_i32_58] : memref<2x!tpu.dma_semaphore, #tpu.memory_space<semaphore_mem>> -> memref<1x!tpu.dma_semaphore, #tpu.memory_space<semaphore_mem>>
      %103 = tpu.memref_squeeze %102 : memref<1x!tpu.dma_semaphore, #tpu.memory_space<semaphore_mem>> -> memref<!tpu.dma_semaphore, #tpu.memory_space<semaphore_mem>>
      tpu.enqueue_dma source(%arg3 : memref<32x128xbf16, #tpu.memory_space<any>>) target(%arg13 : memref<32x128xbf16, #tpu.memory_space<vmem>>) target_semaphore(%103 : memref<!tpu.dma_semaphore, #tpu.memory_space<semaphore_mem>>)
      %c1_i32_59 = arith.constant 1 : i32
      %104 = tpu.memref_slice %arg15[%c1_i32_59] : memref<2x!tpu.dma_semaphore, #tpu.memory_space<semaphore_mem>> -> memref<1x!tpu.dma_semaphore, #tpu.memory_space<semaphore_mem>>
      %105 = tpu.memref_squeeze %104 : memref<1x!tpu.dma_semaphore, #tpu.memory_space<semaphore_mem>> -> memref<!tpu.dma_semaphore, #tpu.memory_space<semaphore_mem>>
      tpu.enqueue_dma source(%arg11 : memref<64x32xbf16, #tpu.memory_space<any>>) target(%arg14 : memref<64x32xbf16, #tpu.memory_space<vmem>>) target_semaphore(%105 : memref<!tpu.dma_semaphore, #tpu.memory_space<semaphore_mem>>)
      %c0_i32_60 = arith.constant 0 : i32
      %106 = tpu.memref_slice %arg15[%c0_i32_60] : memref<2x!tpu.dma_semaphore, #tpu.memory_space<semaphore_mem>> -> memref<1x!tpu.dma_semaphore, #tpu.memory_space<semaphore_mem>>
      %107 = tpu.memref_squeeze %106 : memref<1x!tpu.dma_semaphore, #tpu.memory_space<semaphore_mem>> -> memref<!tpu.dma_semaphore, #tpu.memory_space<semaphore_mem>>
      tpu.wait_dma2 semaphore(%107 : memref<!tpu.dma_semaphore, #tpu.memory_space<semaphore_mem>>) src(%arg3 : memref<32x128xbf16, #tpu.memory_space<any>>) dst(%arg13 : memref<32x128xbf16, #tpu.memory_space<vmem>>)
      %c1_i32_61 = arith.constant 1 : i32
      %108 = tpu.memref_slice %arg15[%c1_i32_61] : memref<2x!tpu.dma_semaphore, #tpu.memory_space<semaphore_mem>> -> memref<1x!tpu.dma_semaphore, #tpu.memory_space<semaphore_mem>>
      %109 = tpu.memref_squeeze %108 : memref<1x!tpu.dma_semaphore, #tpu.memory_space<semaphore_mem>> -> memref<!tpu.dma_semaphore, #tpu.memory_space<semaphore_mem>>
      tpu.wait_dma2 semaphore(%109 : memref<!tpu.dma_semaphore, #tpu.memory_space<semaphore_mem>>) src(%arg11 : memref<64x32xbf16, #tpu.memory_space<any>>) dst(%arg14 : memref<64x32xbf16, #tpu.memory_space<vmem>>)
    } else {
    }
    %c0 = arith.constant 0 : index
    %c0_1 = arith.constant 0 : index
    %c0_2 = arith.constant 0 : index
    %3 = vector.load %arg2[%c0, %c0_1, %c0_2] : memref<1x32x32xbf16, #tpu.memory_space<vmem>>, vector<1x32x32xbf16>
    %4 = vector.shape_cast %3 : vector<1x32x32xbf16> to vector<32x32xbf16>
    %c0_3 = arith.constant 0 : index
    %c0_4 = arith.constant 0 : index
    %5 = vector.load %arg13[%c0_3, %c0_4] : memref<32x128xbf16, #tpu.memory_space<vmem>>, vector<32x128xbf16>
    %cst = arith.constant dense<0.000000e+00> : vector<32x128xf32>
    %6 = tpu.matmul %4, %5, %cst {dimension_numbers = #tpu.dot_dimension_numbers<[1], [0], [0], [1], [0, 0, 1, 1], [], []>} : vector<32x32xbf16>, vector<32x128xbf16>, vector<32x128xf32> -> vector<32x128xf32>
    %7 = vector.extract_strided_slice %6 {offsets = [0, 0], sizes = [32, 64], strides = [1, 1]} : vector<32x128xf32> to vector<32x64xf32>
    %8 = vector.extract_strided_slice %6 {offsets = [0, 64], sizes = [32, 64], strides = [1, 1]} : vector<32x128xf32> to vector<32x64xf32>
    %c0_5 = arith.constant 0 : index
    %c0_6 = arith.constant 0 : index
    %9 = vector.load %arg4[%c0_5, %c0_6] : memref<4x64xf32, #tpu.memory_space<vmem>>, vector<4x64xf32>
    %c0_7 = arith.constant 0 : index
    %c0_8 = arith.constant 0 : index
    %10 = vector.load %arg17[%c0_7, %c0_8] : memref<3x64xf32, #tpu.memory_space<vmem>>, vector<3x64xf32>
    %11 = tpu.concatenate %10, %7 in 0 : vector<3x64xf32>, vector<32x64xf32> -> vector<35x64xf32>
    %12 = vector.extract_strided_slice %11 {offsets = [32, 0], sizes = [3, 64], strides = [1, 1]} : vector<35x64xf32> to vector<3x64xf32>
    %c0_9 = arith.constant 0 : index
    %c0_10 = arith.constant 0 : index
    %13 = vector.load %arg17[%c0_9, %c0_10] : memref<3x64xf32, #tpu.memory_space<vmem>>, vector<3x64xf32>
    tpu.vector_store %arg17[%c0_9, %c0_10], %12 {strides = array<i32>} : memref<3x64xf32, #tpu.memory_space<vmem>>, vector<3x64xf32>,
    %cst_11 = arith.constant 0.000000e+00 : f32
    %14 = vector.broadcast %cst_11 : f32 to vector<32x64xf32>
    %15 = vector.extract_strided_slice %11 {offsets = [0, 0], sizes = [32, 64], strides = [1, 1]} : vector<35x64xf32> to vector<32x64xf32>
    %16 = vector.extract_strided_slice %9 {offsets = [0, 0], sizes = [1, 64], strides = [1, 1]} : vector<4x64xf32> to vector<1x64xf32>
    %17 = vector.broadcast %16 : vector<1x64xf32> to vector<32x64xf32>
    %18 = arith.mulf %15, %17 : vector<32x64xf32>
    %19 = arith.addf %14, %18 : vector<32x64xf32>
    %20 = vector.extract_strided_slice %11 {offsets = [1, 0], sizes = [32, 64], strides = [1, 1]} : vector<35x64xf32> to vector<32x64xf32>
    %21 = vector.extract_strided_slice %9 {offsets = [1, 0], sizes = [1, 64], strides = [1, 1]} : vector<4x64xf32> to vector<1x64xf32>
    %22 = vector.broadcast %21 : vector<1x64xf32> to vector<32x64xf32>
    %23 = arith.mulf %20, %22 : vector<32x64xf32>
    %24 = arith.addf %19, %23 : vector<32x64xf32>
    %25 = vector.extract_strided_slice %11 {offsets = [2, 0], sizes = [32, 64], strides = [1, 1]} : vector<35x64xf32> to vector<32x64xf32>
    %26 = vector.extract_strided_slice %9 {offsets = [2, 0], sizes = [1, 64], strides = [1, 1]} : vector<4x64xf32> to vector<1x64xf32>
    %27 = vector.broadcast %26 : vector<1x64xf32> to vector<32x64xf32>
    %28 = arith.mulf %25, %27 : vector<32x64xf32>
    %29 = arith.addf %24, %28 : vector<32x64xf32>
    %30 = vector.extract_strided_slice %11 {offsets = [3, 0], sizes = [32, 64], strides = [1, 1]} : vector<35x64xf32> to vector<32x64xf32>
    %31 = vector.extract_strided_slice %9 {offsets = [3, 0], sizes = [1, 64], strides = [1, 1]} : vector<4x64xf32> to vector<1x64xf32>
    %32 = vector.broadcast %31 : vector<1x64xf32> to vector<32x64xf32>
    %33 = arith.mulf %30, %32 : vector<32x64xf32>
    %34 = arith.addf %29, %33 : vector<32x64xf32>
    %c0_12 = arith.constant 0 : index
    %c0_13 = arith.constant 0 : index
    %35 = vector.load %arg5[%c0_12, %c0_13] : memref<1x64xf32, #tpu.memory_space<vmem>>, vector<1x64xf32>
    %36 = vector.broadcast %35 : vector<1x64xf32> to vector<32x64xf32>
    %37 = arith.addf %34, %36 : vector<32x64xf32>
    %38 = arith.negf %37 : vector<32x64xf32>
    %39 = math.exp %38 : vector<32x64xf32>
    %cst_14 = arith.constant 1.000000e+00 : f32
    %40 = vector.broadcast %cst_14 : f32 to vector<32x64xf32>
    %41 = arith.addf %40, %39 : vector<32x64xf32>
    %42 = arith.divf %40, %41 : vector<32x64xf32>
    %43 = arith.mulf %37, %42 : vector<32x64xf32>
    %44 = arith.truncf %43 : vector<32x64xf32> to vector<32x64xbf16>
    %c0_15 = arith.constant 0 : index
    %c0_16 = arith.constant 0 : index
    %45 = vector.load %arg6[%c0_15, %c0_16] : memref<64x384xbf16, #tpu.memory_space<vmem>>, vector<64x384xbf16>
    %cst_17 = arith.constant dense<0.000000e+00> : vector<32x384xf32>
    %46 = tpu.matmul %44, %45, %cst_17 {dimension_numbers = #tpu.dot_dimension_numbers<[1], [0], [0], [1], [0, 0, 1, 1], [], []>} : vector<32x64xbf16>, vector<64x384xbf16>, vector<32x384xf32> -> vector<32x384xf32>
    %47 = vector.extract_strided_slice %46 {offsets = [0, 0], sizes = [32, 128], strides = [1, 1]} : vector<32x384xf32> to vector<32x128xf32>
    %48 = vector.extract_strided_slice %46 {offsets = [0, 128], sizes = [32, 16], strides = [1, 1]} : vector<32x384xf32> to vector<32x16xf32>
    %c0_18 = arith.constant 0 : index
    %c0_19 = arith.constant 0 : index
    %49 = vector.load %arg20[%c0_18, %c0_19] : memref<32x16xf32, #tpu.memory_space<vmem>>, vector<32x16xf32>
    tpu.vector_store %arg20[%c0_18, %c0_19], %48 {strides = array<i32>} : memref<32x16xf32, #tpu.memory_space<vmem>>, vector<32x16xf32>,
    %50 = vector.extract_strided_slice %46 {offsets = [0, 256], sizes = [32, 16], strides = [1, 1]} : vector<32x384xf32> to vector<32x16xf32>
    %c0_20 = arith.constant 0 : index
    %c0_21 = arith.constant 0 : index
    %51 = vector.load %arg21[%c0_20, %c0_21] : memref<32x16xf32, #tpu.memory_space<vmem>>, vector<32x16xf32>
    tpu.vector_store %arg21[%c0_20, %c0_21], %50 {strides = array<i32>} : memref<32x16xf32, #tpu.memory_space<vmem>>, vector<32x16xf32>,
    %52 = arith.truncf %47 : vector<32x128xf32> to vector<32x128xbf16>
    %c0_22 = arith.constant 0 : index
    %c0_23 = arith.constant 0 : index
    %53 = vector.load %arg7[%c0_22, %c0_23] : memref<128x64xbf16, #tpu.memory_space<vmem>>, vector<128x64xbf16>
    %cst_24 = arith.constant dense<0.000000e+00> : vector<32x64xf32>
    %54 = tpu.matmul %52, %53, %cst_24 {dimension_numbers = #tpu.dot_dimension_numbers<[1], [0], [0], [1], [0, 0, 1, 1], [], []>} : vector<32x128xbf16>, vector<128x64xbf16>, vector<32x64xf32> -> vector<32x64xf32>
    %c0_25 = arith.constant 0 : index
    %c0_26 = arith.constant 0 : index
    %55 = vector.load %arg8[%c0_25, %c0_26] : memref<1x64xf32, #tpu.memory_space<vmem>>, vector<1x64xf32>
    %56 = vector.broadcast %55 : vector<1x64xf32> to vector<32x64xf32>
    %57 = arith.addf %54, %56 : vector<32x64xf32>
    %cst_27 = arith.constant 0.000000e+00 : f32
    %58 = vector.broadcast %cst_27 : f32 to vector<32x64xf32>
    %59 = arith.maximumf %57, %58 : vector<32x64xf32>
    %60 = vector.broadcast %cst_27 : f32 to vector<32x64xf32>
    %61 = arith.subf %57, %60 : vector<32x64xf32>
    %62 = arith.cmpf one, %61, %61 : vector<32x64xf32>
    %63 = vector.broadcast %cst_27 : f32 to vector<32x64xf32>
    %64 = arith.addf %57, %63 : vector<32x64xf32>
    %65 = math.absf %61 : vector<32x64xf32>
    %cst_28 = arith.constant 0.000000e+00 : f32
    %66 = vector.broadcast %cst_28 : f32 to vector<32x64xf32>
    %67 = arith.subf %66, %65 : vector<32x64xf32>
    %68 = math.exp %67 : vector<32x64xf32>
    %69 = math.log1p %68 : vector<32x64xf32>
    %70 = arith.addf %59, %69 : vector<32x64xf32>
    %71 = arith.select %62, %64, %70 : vector<32x64xi1>, vector<32x64xf32>
    %c0_29 = arith.constant 0 : index
    %c0_30 = arith.constant 0 : index
    %72 = vector.load %arg18[%c0_29, %c0_30] : memref<32x64xf32, #tpu.memory_space<vmem>>, vector<32x64xf32>
    tpu.vector_store %arg18[%c0_29, %c0_30], %71 {strides = array<i32>} : memref<32x64xf32, #tpu.memory_space<vmem>>, vector<32x64xf32>,
    %73 = arith.mulf %71, %43 : vector<32x64xf32>
    %c0_31 = arith.constant 0 : index
    %c0_32 = arith.constant 0 : index
    %74 = vector.load %arg19[%c0_31, %c0_32] : memref<32x64xf32, #tpu.memory_space<vmem>>, vector<32x64xf32>
    tpu.vector_store %arg19[%c0_31, %c0_32], %73 {strides = array<i32>} : memref<32x64xf32, #tpu.memory_space<vmem>>, vector<32x64xf32>,
    %c0_33 = arith.constant 0 : index
    %c0_34 = arith.constant 0 : index
    %75 = vector.load %arg9[%c0_33, %c0_34] : memref<16x64xf32, #tpu.memory_space<vmem>>, vector<16x64xf32>
    %c0_35 = arith.constant 0 : index
    %c0_36 = arith.constant 0 : index
    %76 = vector.load %arg16[%c0_35, %c0_36] : memref<16x64xf32, #tpu.memory_space<vmem>>, vector<16x64xf32>
    %c0_i32_37 = arith.constant 0 : i32
    %c4_i32 = arith.constant 4 : i32
    %77 = arith.addi %c0_i32_37, %c4_i32 : i32
    %c1_i32 = arith.constant 1 : i32
    %78 = scf.for %arg23 = %c0_i32_37 to %77 step %c1_i32 iter_args(%arg24 = %76) -> (vector<16x64xf32>)  : i32 {
      %c8_i32 = arith.constant 8 : i32
      %98 = arith.muli %arg23, %c8_i32 : i32
      %99 = tpu.assume_multiple %98, 8 : i32
      %100 = arith.index_cast %99 : i32 to index
      %c0_52 = arith.constant 0 : index
      %101 = vector.load %arg18[%100, %c0_52] : memref<32x64xf32, #tpu.memory_space<vmem>>, vector<8x64xf32>
      %102 = arith.index_cast %99 : i32 to index
      %c0_53 = arith.constant 0 : index
      %103 = vector.load %arg19[%102, %c0_53] : memref<32x64xf32, #tpu.memory_space<vmem>>, vector<8x64xf32>
      %104 = arith.index_cast %99 : i32 to index
      %c0_54 = arith.constant 0 : index
      %105 = vector.load %arg20[%104, %c0_54] : memref<32x16xf32, #tpu.memory_space<vmem>>, vector<8x16xf32>
      %106 = arith.index_cast %99 : i32 to index
      %c0_55 = arith.constant 0 : index
      %107 = vector.load %arg21[%106, %c0_55] : memref<32x16xf32, #tpu.memory_space<vmem>>, vector<8x16xf32>
      %108 = vector.shape_cast %101 : vector<8x64xf32> to vector<8x1x64xf32>
      %109 = vector.shape_cast %75 : vector<16x64xf32> to vector<1x16x64xf32>
      %110 = vector.broadcast %108 : vector<8x1x64xf32> to vector<8x16x64xf32>
      %111 = vector.broadcast %109 : vector<1x16x64xf32> to vector<8x16x64xf32>
      %112 = arith.mulf %110, %111 : vector<8x16x64xf32>
      %113 = math.exp %112 : vector<8x16x64xf32>
      %114 = vector.shape_cast %105 : vector<8x16xf32> to vector<8x16x1xf32>
      %115 = vector.shape_cast %103 : vector<8x64xf32> to vector<8x1x64xf32>
      %116 = vector.broadcast %114 : vector<8x16x1xf32> to vector<8x16x64xf32>
      %117 = vector.broadcast %115 : vector<8x1x64xf32> to vector<8x16x64xf32>
      %118 = arith.mulf %116, %117 : vector<8x16x64xf32>
      %119 = vector.extract_strided_slice %113 {offsets = [0, 0, 0], sizes = [1, 16, 64], strides = [1, 1, 1]} : vector<8x16x64xf32> to vector<1x16x64xf32>
      %120 = vector.shape_cast %119 : vector<1x16x64xf32> to vector<16x64xf32>
      %121 = arith.mulf %120, %arg24 : vector<16x64xf32>
      %122 = vector.extract_strided_slice %118 {offsets = [0, 0, 0], sizes = [1, 16, 64], strides = [1, 1, 1]} : vector<8x16x64xf32> to vector<1x16x64xf32>
      %123 = vector.shape_cast %122 : vector<1x16x64xf32> to vector<16x64xf32>
      %124 = arith.addf %121, %123 : vector<16x64xf32>
      %125 = vector.extract_strided_slice %107 {offsets = [0, 0], sizes = [1, 16], strides = [1, 1]} : vector<8x16xf32> to vector<1x16xf32>
      %cst_56 = arith.constant dense<0.000000e+00> : vector<1x64xf32>
      %126 = tpu.matmul %125, %124, %cst_56 {dimension_numbers = #tpu.dot_dimension_numbers<[1], [0], [0], [1], [0, 0, 1, 1], [], []>} : vector<1x16xf32>, vector<16x64xf32>, vector<1x64xf32> -> vector<1x64xf32>
      %127 = vector.extract_strided_slice %113 {offsets = [1, 0, 0], sizes = [1, 16, 64], strides = [1, 1, 1]} : vector<8x16x64xf32> to vector<1x16x64xf32>
      %128 = vector.shape_cast %127 : vector<1x16x64xf32> to vector<16x64xf32>
      %129 = arith.mulf %128, %124 : vector<16x64xf32>
      %130 = vector.extract_strided_slice %118 {offsets = [1, 0, 0], sizes = [1, 16, 64], strides = [1, 1, 1]} : vector<8x16x64xf32> to vector<1x16x64xf32>
      %131 = vector.shape_cast %130 : vector<1x16x64xf32> to vector<16x64xf32>
      %132 = arith.addf %129, %131 : vector<16x64xf32>
      %133 = vector.extract_strided_slice %107 {offsets = [1, 0], sizes = [1, 16], strides = [1, 1]} : vector<8x16xf32> to vector<1x16xf32>
      %cst_57 = arith.constant dense<0.000000e+00> : vector<1x64xf32>
      %134 = tpu.matmul %133, %132, %cst_57 {dimension_numbers = #tpu.dot_dimension_numbers<[1], [0], [0], [1], [0, 0, 1, 1], [], []>} : vector<1x16xf32>, vector<16x64xf32>, vector<1x64xf32> -> vector<1x64xf32>
      %135 = vector.extract_strided_slice %113 {offsets = [2, 0, 0], sizes = [1, 16, 64], strides = [1, 1, 1]} : vector<8x16x64xf32> to vector<1x16x64xf32>
      %136 = vector.shape_cast %135 : vector<1x16x64xf32> to vector<16x64xf32>
      %137 = arith.mulf %136, %132 : vector<16x64xf32>
      %138 = vector.extract_strided_slice %118 {offsets = [2, 0, 0], sizes = [1, 16, 64], strides = [1, 1, 1]} : vector<8x16x64xf32> to vector<1x16x64xf32>
      %139 = vector.shape_cast %138 : vector<1x16x64xf32> to vector<16x64xf32>
      %140 = arith.addf %137, %139 : vector<16x64xf32>
      %141 = vector.extract_strided_slice %107 {offsets = [2, 0], sizes = [1, 16], strides = [1, 1]} : vector<8x16xf32> to vector<1x16xf32>
      %cst_58 = arith.constant dense<0.000000e+00> : vector<1x64xf32>
      %142 = tpu.matmul %141, %140, %cst_58 {dimension_numbers = #tpu.dot_dimension_numbers<[1], [0], [0], [1], [0, 0, 1, 1], [], []>} : vector<1x16xf32>, vector<16x64xf32>, vector<1x64xf32> -> vector<1x64xf32>
      %143 = vector.extract_strided_slice %113 {offsets = [3, 0, 0], sizes = [1, 16, 64], strides = [1, 1, 1]} : vector<8x16x64xf32> to vector<1x16x64xf32>
      %144 = vector.shape_cast %143 : vector<1x16x64xf32> to vector<16x64xf32>
      %145 = arith.mulf %144, %140 : vector<16x64xf32>
      %146 = vector.extract_strided_slice %118 {offsets = [3, 0, 0], sizes = [1, 16, 64], strides = [1, 1, 1]} : vector<8x16x64xf32> to vector<1x16x64xf32>
      %147 = vector.shape_cast %146 : vector<1x16x64xf32> to vector<16x64xf32>
      %148 = arith.addf %145, %147 : vector<16x64xf32>
      %149 = vector.extract_strided_slice %107 {offsets = [3, 0], sizes = [1, 16], strides = [1, 1]} : vector<8x16xf32> to vector<1x16xf32>
      %cst_59 = arith.constant dense<0.000000e+00> : vector<1x64xf32>
      %150 = tpu.matmul %149, %148, %cst_59 {dimension_numbers = #tpu.dot_dimension_numbers<[1], [0], [0], [1], [0, 0, 1, 1], [], []>} : vector<1x16xf32>, vector<16x64xf32>, vector<1x64xf32> -> vector<1x64xf32>
      %151 = vector.extract_strided_slice %113 {offsets = [4, 0, 0], sizes = [1, 16, 64], strides = [1, 1, 1]} : vector<8x16x64xf32> to vector<1x16x64xf32>
      %152 = vector.shape_cast %151 : vector<1x16x64xf32> to vector<16x64xf32>
      %153 = arith.mulf %152, %148 : vector<16x64xf32>
      %154 = vector.extract_strided_slice %118 {offsets = [4, 0, 0], sizes = [1, 16, 64], strides = [1, 1, 1]} : vector<8x16x64xf32> to vector<1x16x64xf32>
      %155 = vector.shape_cast %154 : vector<1x16x64xf32> to vector<16x64xf32>
      %156 = arith.addf %153, %155 : vector<16x64xf32>
      %157 = vector.extract_strided_slice %107 {offsets = [4, 0], sizes = [1, 16], strides = [1, 1]} : vector<8x16xf32> to vector<1x16xf32>
      %cst_60 = arith.constant dense<0.000000e+00> : vector<1x64xf32>
      %158 = tpu.matmul %157, %156, %cst_60 {dimension_numbers = #tpu.dot_dimension_numbers<[1], [0], [0], [1], [0, 0, 1, 1], [], []>} : vector<1x16xf32>, vector<16x64xf32>, vector<1x64xf32> -> vector<1x64xf32>
      %159 = vector.extract_strided_slice %113 {offsets = [5, 0, 0], sizes = [1, 16, 64], strides = [1, 1, 1]} : vector<8x16x64xf32> to vector<1x16x64xf32>
      %160 = vector.shape_cast %159 : vector<1x16x64xf32> to vector<16x64xf32>
      %161 = arith.mulf %160, %156 : vector<16x64xf32>
      %162 = vector.extract_strided_slice %118 {offsets = [5, 0, 0], sizes = [1, 16, 64], strides = [1, 1, 1]} : vector<8x16x64xf32> to vector<1x16x64xf32>
      %163 = vector.shape_cast %162 : vector<1x16x64xf32> to vector<16x64xf32>
      %164 = arith.addf %161, %163 : vector<16x64xf32>
      %165 = vector.extract_strided_slice %107 {offsets = [5, 0], sizes = [1, 16], strides = [1, 1]} : vector<8x16xf32> to vector<1x16xf32>
      %cst_61 = arith.constant dense<0.000000e+00> : vector<1x64xf32>
      %166 = tpu.matmul %165, %164, %cst_61 {dimension_numbers = #tpu.dot_dimension_numbers<[1], [0], [0], [1], [0, 0, 1, 1], [], []>} : vector<1x16xf32>, vector<16x64xf32>, vector<1x64xf32> -> vector<1x64xf32>
      %167 = vector.extract_strided_slice %113 {offsets = [6, 0, 0], sizes = [1, 16, 64], strides = [1, 1, 1]} : vector<8x16x64xf32> to vector<1x16x64xf32>
      %168 = vector.shape_cast %167 : vector<1x16x64xf32> to vector<16x64xf32>
      %169 = arith.mulf %168, %164 : vector<16x64xf32>
      %170 = vector.extract_strided_slice %118 {offsets = [6, 0, 0], sizes = [1, 16, 64], strides = [1, 1, 1]} : vector<8x16x64xf32> to vector<1x16x64xf32>
      %171 = vector.shape_cast %170 : vector<1x16x64xf32> to vector<16x64xf32>
      %172 = arith.addf %169, %171 : vector<16x64xf32>
      %173 = vector.extract_strided_slice %107 {offsets = [6, 0], sizes = [1, 16], strides = [1, 1]} : vector<8x16xf32> to vector<1x16xf32>
      %cst_62 = arith.constant dense<0.000000e+00> : vector<1x64xf32>
      %174 = tpu.matmul %173, %172, %cst_62 {dimension_numbers = #tpu.dot_dimension_numbers<[1], [0], [0], [1], [0, 0, 1, 1], [], []>} : vector<1x16xf32>, vector<16x64xf32>, vector<1x64xf32> -> vector<1x64xf32>
      %175 = vector.extract_strided_slice %113 {offsets = [7, 0, 0], sizes = [1, 16, 64], strides = [1, 1, 1]} : vector<8x16x64xf32> to vector<1x16x64xf32>
      %176 = vector.shape_cast %175 : vector<1x16x64xf32> to vector<16x64xf32>
      %177 = arith.mulf %176, %172 : vector<16x64xf32>
      %178 = vector.extract_strided_slice %118 {offsets = [7, 0, 0], sizes = [1, 16, 64], strides = [1, 1, 1]} : vector<8x16x64xf32> to vector<1x16x64xf32>
      %179 = vector.shape_cast %178 : vector<1x16x64xf32> to vector<16x64xf32>
      %180 = arith.addf %177, %179 : vector<16x64xf32>
      %181 = vector.extract_strided_slice %107 {offsets = [7, 0], sizes = [1, 16], strides = [1, 1]} : vector<8x16xf32> to vector<1x16xf32>
      %cst_63 = arith.constant dense<0.000000e+00> : vector<1x64xf32>
      %182 = tpu.matmul %181, %180, %cst_63 {dimension_numbers = #tpu.dot_dimension_numbers<[1], [0], [0], [1], [0, 0, 1, 1], [], []>} : vector<1x16xf32>, vector<16x64xf32>, vector<1x64xf32> -> vector<1x64xf32>
      %183 = tpu.concatenate %126, %134, %142, %150, %158, %166, %174, %182 in 0 : vector<1x64xf32>, vector<1x64xf32>, vector<1x64xf32>, vector<1x64xf32>, vector<1x64xf32>, vector<1x64xf32>, vector<1x64xf32>, vector<1x64xf32> -> vector<8x64xf32>
      %184 = arith.index_cast %99 : i32 to index
      %c0_64 = arith.constant 0 : index
      %185 = vector.load %arg22[%184, %c0_64] : memref<32x64xf32, #tpu.memory_space<vmem>>, vector<8x64xf32>
      tpu.vector_store %arg22[%184, %c0_64], %183 {strides = array<i32>} : memref<32x64xf32, #tpu.memory_space<vmem>>, vector<8x64xf32>,
      scf.yield %180 : vector<16x64xf32>
    }
    %c4_i32_38 = arith.constant 4 : i32
    %c0_39 = arith.constant 0 : index
    %c0_40 = arith.constant 0 : index
    %79 = vector.load %arg16[%c0_39, %c0_40] : memref<16x64xf32, #tpu.memory_space<vmem>>, vector<16x64xf32>
    tpu.vector_store %arg16[%c0_39, %c0_40], %78 {strides = array<i32>} : memref<16x64xf32, #tpu.memory_space<vmem>>, vector<16x64xf32>,
    %c0_41 = arith.constant 0 : index
    %c0_42 = arith.constant 0 : index
    %80 = vector.load %arg22[%c0_41, %c0_42] : memref<32x64xf32, #tpu.memory_space<vmem>>, vector<32x64xf32>
    %c0_43 = arith.constant 0 : index
    %c0_44 = arith.constant 0 : index
    %81 = vector.load %arg10[%c0_43, %c0_44] : memref<1x64xf32, #tpu.memory_space<vmem>>, vector<1x64xf32>
    %82 = vector.broadcast %81 : vector<1x64xf32> to vector<32x64xf32>
    %83 = arith.mulf %43, %82 : vector<32x64xf32>
    %84 = arith.addf %80, %83 : vector<32x64xf32>
    %85 = arith.negf %8 : vector<32x64xf32>
    %86 = math.exp %85 : vector<32x64xf32>
    %cst_45 = arith.constant 1.000000e+00 : f32
    %87 = vector.broadcast %cst_45 : f32 to vector<32x64xf32>
    %88 = arith.addf %87, %86 : vector<32x64xf32>
    %89 = arith.divf %87, %88 : vector<32x64xf32>
    %90 = arith.mulf %8, %89 : vector<32x64xf32>
    %91 = arith.mulf %84, %90 : vector<32x64xf32>
    %92 = arith.truncf %91 : vector<32x64xf32> to vector<32x64xbf16>
    %c0_46 = arith.constant 0 : index
    %c0_47 = arith.constant 0 : index
    %93 = vector.load %arg14[%c0_46, %c0_47] : memref<64x32xbf16, #tpu.memory_space<vmem>>, vector<64x32xbf16>
    %cst_48 = arith.constant dense<0.000000e+00> : vector<32x32xf32>
    %94 = tpu.matmul %92, %93, %cst_48 {dimension_numbers = #tpu.dot_dimension_numbers<[1], [0], [0], [1], [0, 0, 1, 1], [], []>} : vector<32x64xbf16>, vector<64x32xbf16>, vector<32x32xf32> -> vector<32x32xf32>
    %c0_49 = arith.constant 0 : index
    %c0_50 = arith.constant 0 : index
    %c0_51 = arith.constant 0 : index
    %95 = vector.load %arg12[%c0_49, %c0_50, %c0_51] : memref<1x32x32xf32, #tpu.memory_space<vmem>>, vector<1x32x32xf32>
    %96 = vector.shape_cast %95 : vector<1x32x32xf32> to vector<32x32xf32>
    %97 = vector.shape_cast %94 : vector<32x32xf32> to vector<1x32x32xf32>
    tpu.vector_store %arg12[%c0_49, %c0_50, %c0_51], %97 {strides = array<i32>} : memref<1x32x32xf32, #tpu.memory_space<vmem>>, vector<1x32x32xf32>,
    return
  }
  func.func @transform_0(%arg0: i32, %arg1: i32) -> (i32, i32, i32) {
    %c0_i32 = arith.constant 0 : i32
    %c0_i32_0 = arith.constant 0 : i32
    return %arg0, %arg1, %c0_i32 : i32, i32, i32
  }
  func.func @transform_2(%arg0: i32, %arg1: i32) -> (i32, i32) {
    %c0_i32 = arith.constant 0 : i32
    %c0_i32_0 = arith.constant 0 : i32
    %c0_i32_1 = arith.constant 0 : i32
    return %c0_i32, %c0_i32_0 : i32, i32
  }
  func.func @transform_3(%arg0: i32, %arg1: i32) -> (i32, i32) {
    %c0_i32 = arith.constant 0 : i32
    %c0_i32_0 = arith.constant 0 : i32
    %c0_i32_1 = arith.constant 0 : i32
    return %c0_i32, %c0_i32_0 : i32, i32
  }
  func.func @transform_4(%arg0: i32, %arg1: i32) -> (i32, i32) {
    %c0_i32 = arith.constant 0 : i32
    %c0_i32_0 = arith.constant 0 : i32
    %c0_i32_1 = arith.constant 0 : i32
    return %c0_i32, %c0_i32_0 : i32, i32
  }
  func.func @transform_5(%arg0: i32, %arg1: i32) -> (i32, i32) {
    %c0_i32 = arith.constant 0 : i32
    %c0_i32_0 = arith.constant 0 : i32
    %c0_i32_1 = arith.constant 0 : i32
    return %c0_i32, %c0_i32_0 : i32, i32
  }
  func.func @transform_6(%arg0: i32, %arg1: i32) -> (i32, i32) {
    %c0_i32 = arith.constant 0 : i32
    %c0_i32_0 = arith.constant 0 : i32
    %c0_i32_1 = arith.constant 0 : i32
    return %c0_i32, %c0_i32_0 : i32, i32
  }
  func.func @transform_7(%arg0: i32, %arg1: i32) -> (i32, i32) {
    %c0_i32 = arith.constant 0 : i32
    %c0_i32_0 = arith.constant 0 : i32
    %c0_i32_1 = arith.constant 0 : i32
    return %c0_i32, %c0_i32_0 : i32, i32
  }
  func.func @transform_8(%arg0: i32, %arg1: i32) -> (i32, i32) {
    %c0_i32 = arith.constant 0 : i32
    %c0_i32_0 = arith.constant 0 : i32
    %c0_i32_1 = arith.constant 0 : i32
    return %c0_i32, %c0_i32_0 : i32, i32
  }
  func.func @transform_10(%arg0: i32, %arg1: i32) -> (i32, i32, i32) {
    %c0_i32 = arith.constant 0 : i32
    %c0_i32_0 = arith.constant 0 : i32
    return %arg0, %arg1, %c0_i32 : i32, i32, i32
  }
}

</mosaic_0001>

<llo_original>
// kernel: tpu_custom_call.1
$region0: #{tpu_custom_call.1}
  #allocation0 [shape = 'u32[]', space=smem, size = 0x4, offset = 0x4, fixed_abs, tag = 'smem constant byte address 0x4 - core index']
  #allocation1 [shape = 'u32[144,128]{1,0:T(1,128)}', space=vmem, size = 0x12000, scoped, tag = 'internal scratch']
  #allocation2 [shape = 'bf16[32,128]{1,0:T(16,128)(2,1)}', space=vmem, size = 0x2000, scoped, tag = 'scratch operand']
  #allocation3 [shape = 'bf16[64,32]{1,0:T(16,128)(2,1)}', space=vmem, size = 0x4000, scoped, tag = 'scratch operand']
  #allocation4 [shape = 's32[2]{0}', space=sflag, size = 0x8, scoped, tag = 'scratch operand']
  #allocation5 [shape = 'f32[16,64]{1,0:T(8,128)}', space=vmem, size = 0x2000, scoped, tag = 'scratch operand']
  #allocation6 [shape = 'f32[3,64]{1,0:T(4,128)}', space=vmem, size = 0x800, scoped, tag = 'scratch operand']
  #allocation7 [shape = 'f32[32,64]{1,0:T(8,128)}', space=vmem, size = 0x4000, scoped, tag = 'scratch operand']
  #allocation8 [shape = 'f32[32,64]{1,0:T(8,128)}', space=vmem, size = 0x4000, scoped, tag = 'scratch operand']
  #allocation9 [shape = 'f32[32,16]{1,0:T(8,128)}', space=vmem, size = 0x4000, scoped, tag = 'scratch operand']
  #allocation10 [shape = 'f32[32,16]{1,0:T(8,128)}', space=vmem, size = 0x4000, scoped, tag = 'scratch operand']
  #allocation11 [shape = 'f32[32,64]{1,0:T(8,128)}', space=vmem, size = 0x4000, scoped, tag = 'scratch operand']
  #allocation19 [shape = 's32[]', space=sflag, size = 0x4, offset = 0, fixed_abs, tag = 'sflag constant byte address 0x0 - dummy sync flag']
  #allocation20 [shape = 's32[]', space=sflag, size = 0x4, offset = 0, fixed_abs, tag = 'sflag constant byte address 0x0 - dummy sync flag']
  #allocation21 [shape = 'u32[]', space=smem, size = 0x4, offset = 0x44, fixed_abs, tag = 'smem constant byte address 0x44 - assertion arg 0']
  #allocation22 [shape = 'u32[]', space=smem, size = 0x4, offset = 0x48, fixed_abs, tag = 'smem constant byte address 0x48 - assertion arg 1']
  #allocation23 [shape = 's32[]', space=sflag, size = 0x4, offset = 0, fixed_abs, tag = 'sflag constant byte address 0x0 - dummy sync flag']
  %s0 = inlined_call_operand.vmem [shape: bf16[2,32,32], index: 0, kind: input, shape index: {}]
  %s1 = inlined_call_operand.hbm [shape: bf16[32,128], index: 1, kind: input, shape index: {}]
  %s2 = inlined_call_operand.hbm [shape: f32[4,64], index: 2, kind: input, shape index: {}]
  %s3 = inlined_call_operand.vmem [shape: f32[1,64], index: 3, kind: input, shape index: {}]
  %s4 = inlined_call_operand.vmem [shape: bf16[64,384], index: 4, kind: input, shape index: {}]
  %s5 = inlined_call_operand.vmem [shape: bf16[128,64], index: 5, kind: input, shape index: {}]
  %s6 = inlined_call_operand.vmem [shape: f32[1,64], index: 6, kind: input, shape index: {}]
  %s7 = inlined_call_operand.hbm [shape: f32[16,64], index: 7, kind: input, shape index: {}]
  %s8 = inlined_call_operand.hbm [shape: f32[1,64], index: 8, kind: input, shape index: {}]
  %s9 = inlined_call_operand.vmem [shape: bf16[64,32], index: 9, kind: input, shape index: {}]
  %s10 = inlined_call_operand.hbm [shape: f32[2,32,32], index: 10, kind: output, shape index: {}]
  %s11 = sld [smem:[#allocation0]]
  $region126: #{tpu_custom_call.1} parent=0
    _
  %s13 = ssub.s32 1, %s11
  %s14 = scalar_select 0, %s13, %s11
  $region1: #{tpu_custom_call.1} parent=0
    #allocation12 [shape = 'u8[2048]{0}', space=vmem, size = 0x800, scoped, tag = 'input window, operand 2, single buffered']
    #allocation13 [shape = 's32[2]{0}', space=sflag, size = 0x8, scoped, tag = 'scoped memory for tpu_custom_call.1']
    #allocation14 [shape = 's32[2]{0}', space=sflag, size = 0x8, scoped, tag = 'scoped memory for tpu_custom_call.1']
    #allocation15 [shape = 'u8[8192]{0}', space=vmem, size = 0x2000, scoped, tag = 'input window, operand 7, single buffered']
    #allocation16 [shape = 's32[1]{0}', space=sflag, size = 0x4, scoped, tag = 'scoped memory for tpu_custom_call.1']
    #allocation17 [shape = 'u8[512]{0}', space=vmem, size = 0x400, scoped, tag = 'input window, operand 8, single buffered']
    #allocation18 [shape = 'u8[32768]{0}', space=vmem, size = 0x8000, scoped, tag = 'output window, operand 0']
    %15 = vsyncpa [#allocation13], 0
    %16 = vsyncpa [#allocation16], 0
    %17 = vsyncpa [#allocation14], 0
    %s18 = scalar_lea.sflag [#allocation14], 1
    %19 = vsyncpa %s18, 0
    loop: start=0, step=1, limit=4
    $region2: #{tpu_custom_call.1} parent=1 // loop_pre_header
      _
    $region3: #{tpu_custom_call.1} parent=1 // loop_header
      %s21 = sphi 0, %s25
      %p22 = scmp.ge.s32.totalorder %s21, 4
      %s28 = sphi 0, %s40
      %s29 = sphi 0, %s36
      %s30 = sphi 0, %s28
      %s31 = sphi 0, %s29
      %s32 = sphi 0, %s30
      %s33 = sphi 0, %s31
      %s45 = sphi 0, %s47
      %s48 = sphi 0, %s45
      %s49 = sphi 0, %s48
      %s65 = sphi 0, %s49
      %s69 = sphi 0, %s69
      %s71 = sphi 0, %s69
      %s72 = sphi 0, %s71
      %s86 = sphi 0, %s72
      %s90 = sphi 0, %s90
      %s92 = sphi 0, %s90
      %s93 = sphi 0, %s92
      %s107 = sphi 0, %s93
      %s111 = sphi 0, %s111
      %s113 = sphi 0, %s111
      %s114 = sphi 0, %s113
      %s128 = sphi 0, %s114
      %s132 = sphi 0, %s132
      %s134 = sphi 0, %s132
      %s135 = sphi 0, %s134
      %s149 = sphi 0, %s135
      %s153 = sphi 0, %s153
      %s155 = sphi 0, %s153
      %s156 = sphi 0, %s155
      %s170 = sphi 0, %s156
      %s174 = sphi 0, %s174
      %s176 = sphi 0, %s174
      %s177 = sphi 0, %s176
      %s191 = sphi 0, %s177
      %s195 = sphi 0, %s195
      %s197 = sphi 0, %s195
      %s198 = sphi 0, %s197
      %s212 = sphi 0, %s198
      %s220 = sphi 0, %s222
      %s223 = sphi 0, %s220
      %s224 = sphi 0, %s223
      %s240 = sphi 0, %s224
    $region4: #{tpu_custom_call.1} parent=1 // loop_header_branch
      %24 = sbr.rel (%p22) target = $region8
    $region5: #{tpu_custom_call.1} parent=1 // loop_body
      %s26 = ssub.s32 %s21, 1
      %s27 = ssub.s32 %s21, 2
      %s34 = sadd.s32 1, %s29
      %p35 = scmp.ge.s32.totalorder %s34, 1
      %s36 = scalar_select %p35, 0, %s34
      %s37 = sadd.s32 1, %s28
      %s38 = scalar_select %p35, %s37, %s28
      %p39 = scmp.ge.s32.totalorder %s38, 2
      %s40 = scalar_select %p39, 0, %s38
      %s41 = ssub.s32 %s28, %s40
      %s42 = ssub.s32 %s29, %s36
      %s43 = sor.u32 %s41, %s42
      %p44 = scmp.eq.s32.totalorder %s43, 0
      %s46 = sadd.s32 %s45, 1
      %s47 = scalar_select %p44, %s45, %s46
      %p50 = pneg %p44
      %p51 = scmp.eq.s32.totalorder %s21, 1
      %p52 = por %p50, %p51
      %p53 = scmp.ne.s32.totalorder %s45, %s48
      %p54 = scmp.eq.s32.totalorder %s21, 0
      %p55 = por %p53, %p54
      %p56 = scmp.ne.s32.totalorder %s45, %s48
      %p57 = scmp.eq.s32.totalorder %s26, 1
      %p58 = por %p56, %p57
      %p59 = scmp.ne.s32.totalorder %s48, %s49
      %p60 = scmp.eq.s32.totalorder %s26, 0
      %p61 = por %p59, %p60
      %p62 = scmp.ne.s32.totalorder %s48, %s49
      %p63 = scmp.eq.s32.totalorder %s27, 1
      %p64 = por %p62, %p63
      %p66 = scmp.ne.s32.totalorder %s49, %s65
      %p67 = scmp.eq.s32.totalorder %s27, 0
      %p68 = por %p66, %p67
      %s70 = sadd.s32 %s69, 1
      %p73 = scmp.eq.s32.totalorder %s21, 1
      %p74 = scmp.ne.s32.totalorder %s69, %s71
      %p75 = scmp.eq.s32.totalorder %s21, 0
      %p76 = por %p74, %p75
      %p77 = scmp.ne.s32.totalorder %s69, %s71
      %p78 = scmp.eq.s32.totalorder %s26, 1
      %p79 = por %p77, %p78
      %p80 = scmp.ne.s32.totalorder %s71, %s72
      %p81 = scmp.eq.s32.totalorder %s26, 0
      %p82 = por %p80, %p81
      %p83 = scmp.ne.s32.totalorder %s71, %s72
      %p84 = scmp.eq.s32.totalorder %s27, 1
      %p85 = por %p83, %p84
      %p87 = scmp.ne.s32.totalorder %s72, %s86
      %p88 = scmp.eq.s32.totalorder %s27, 0
      %p89 = por %p87, %p88
      %s91 = sadd.s32 %s90, 1
      %p94 = scmp.eq.s32.totalorder %s21, 1
      %p95 = scmp.ne.s32.totalorder %s90, %s92
      %p96 = scmp.eq.s32.totalorder %s21, 0
      %p97 = por %p95, %p96
      %p98 = scmp.ne.s32.totalorder %s90, %s92
      %p99 = scmp.eq.s32.totalorder %s26, 1
      %p100 = por %p98, %p99
      %p101 = scmp.ne.s32.totalorder %s92, %s93
      %p102 = scmp.eq.s32.totalorder %s26, 0
      %p103 = por %p101, %p102
      %p104 = scmp.ne.s32.totalorder %s92, %s93
      %p105 = scmp.eq.s32.totalorder %s27, 1
      %p106 = por %p104, %p105
      %p108 = scmp.ne.s32.totalorder %s93, %s107
      %p109 = scmp.eq.s32.totalorder %s27, 0
      %p110 = por %p108, %p109
      %s112 = sadd.s32 %s111, 1
      %p115 = scmp.eq.s32.totalorder %s21, 1
      %p116 = scmp.ne.s32.totalorder %s111, %s113
      %p117 = scmp.eq.s32.totalorder %s21, 0
      %p118 = por %p116, %p117
      %p119 = scmp.ne.s32.totalorder %s111, %s113
      %p120 = scmp.eq.s32.totalorder %s26, 1
      %p121 = por %p119, %p120
      %p122 = scmp.ne.s32.totalorder %s113, %s114
      %p123 = scmp.eq.s32.totalorder %s26, 0
      %p124 = por %p122, %p123
      %p125 = scmp.ne.s32.totalorder %s113, %s114
      %p126 = scmp.eq.s32.totalorder %s27, 1
      %p127 = por %p125, %p126
      %p129 = scmp.ne.s32.totalorder %s114, %s128
      %p130 = scmp.eq.s32.totalorder %s27, 0
      %p131 = por %p129, %p130
      %s133 = sadd.s32 %s132, 1
      %p136 = scmp.eq.s32.totalorder %s21, 1
      %p137 = scmp.ne.s32.totalorder %s132, %s134
      %p138 = scmp.eq.s32.totalorder %s21, 0
      %p139 = por %p137, %p138
      %p140 = scmp.ne.s32.totalorder %s132, %s134
      %p141 = scmp.eq.s32.totalorder %s26, 1
      %p142 = por %p140, %p141
      %p143 = scmp.ne.s32.totalorder %s134, %s135
      %p144 = scmp.eq.s32.totalorder %s26, 0
      %p145 = por %p143, %p144
      %p146 = scmp.ne.s32.totalorder %s134, %s135
      %p147 = scmp.eq.s32.totalorder %s27, 1
      %p148 = por %p146, %p147
      %p150 = scmp.ne.s32.totalorder %s135, %s149
      %p151 = scmp.eq.s32.totalorder %s27, 0
      %p152 = por %p150, %p151
      %s154 = sadd.s32 %s153, 1
      %p157 = scmp.eq.s32.totalorder %s21, 1
      %p158 = scmp.ne.s32.totalorder %s153, %s155
      %p159 = scmp.eq.s32.totalorder %s21, 0
      %p160 = por %p158, %p159
      %p161 = scmp.ne.s32.totalorder %s153, %s155
      %p162 = scmp.eq.s32.totalorder %s26, 1
      %p163 = por %p161, %p162
      %p164 = scmp.ne.s32.totalorder %s155, %s156
      %p165 = scmp.eq.s32.totalorder %s26, 0
      %p166 = por %p164, %p165
      %p167 = scmp.ne.s32.totalorder %s155, %s156
      %p168 = scmp.eq.s32.totalorder %s27, 1
      %p169 = por %p167, %p168
      %p171 = scmp.ne.s32.totalorder %s156, %s170
      %p172 = scmp.eq.s32.totalorder %s27, 0
      %p173 = por %p171, %p172
      %s175 = sadd.s32 %s174, 1
      %p178 = scmp.eq.s32.totalorder %s21, 1
      %p179 = scmp.ne.s32.totalorder %s174, %s176
      %p180 = scmp.eq.s32.totalorder %s21, 0
      %p181 = por %p179, %p180
      %p182 = scmp.ne.s32.totalorder %s174, %s176
      %p183 = scmp.eq.s32.totalorder %s26, 1
      %p184 = por %p182, %p183
      %p185 = scmp.ne.s32.totalorder %s176, %s177
      %p186 = scmp.eq.s32.totalorder %s26, 0
      %p187 = por %p185, %p186
      %p188 = scmp.ne.s32.totalorder %s176, %s177
      %p189 = scmp.eq.s32.totalorder %s27, 1
      %p190 = por %p188, %p189
      %p192 = scmp.ne.s32.totalorder %s177, %s191
      %p193 = scmp.eq.s32.totalorder %s27, 0
      %p194 = por %p192, %p193
      %s196 = sadd.s32 %s195, 1
      %p199 = scmp.eq.s32.totalorder %s21, 1
      %p200 = scmp.ne.s32.totalorder %s195, %s197
      %p201 = scmp.eq.s32.totalorder %s21, 0
      %p202 = por %p200, %p201
      %p203 = scmp.ne.s32.totalorder %s195, %s197
      %p204 = scmp.eq.s32.totalorder %s26, 1
      %p205 = por %p203, %p204
      %p206 = scmp.ne.s32.totalorder %s197, %s198
      %p207 = scmp.eq.s32.totalorder %s26, 0
      %p208 = por %p206, %p207
      %p209 = scmp.ne.s32.totalorder %s197, %s198
      %p210 = scmp.eq.s32.totalorder %s27, 1
      %p211 = por %p209, %p210
      %p213 = scmp.ne.s32.totalorder %s198, %s212
      %p214 = scmp.eq.s32.totalorder %s27, 0
      %p215 = por %p213, %p214
      %s216 = ssub.s32 %s28, %s40
      %s217 = ssub.s32 %s29, %s36
      %s218 = sor.u32 %s216, %s217
      %p219 = scmp.eq.s32.totalorder %s218, 0
      %s221 = sadd.s32 %s220, 1
      %s222 = scalar_select %p219, %s220, %s221
      %p225 = pneg %p219
      %p226 = scmp.eq.s32.totalorder %s21, 1
      %p227 = por %p225, %p226
      %p228 = scmp.ne.s32.totalorder %s220, %s223
      %p229 = scmp.eq.s32.totalorder %s21, 0
      %p230 = por %p228, %p229
      %p231 = scmp.ne.s32.totalorder %s220, %s223
      %p232 = scmp.eq.s32.totalorder %s26, 1
      %p233 = por %p231, %p232
      %p234 = scmp.ne.s32.totalorder %s223, %s224
      %p235 = scmp.eq.s32.totalorder %s26, 0
      %p236 = por %p234, %p235
      %p237 = scmp.ne.s32.totalorder %s223, %s224
      %p238 = scmp.eq.s32.totalorder %s27, 1
      %p239 = por %p237, %p238
      %p241 = scmp.ne.s32.totalorder %s224, %s240
      %p242 = scmp.eq.s32.totalorder %s27, 0
      %p243 = por %p241, %p242
      %p244 = scmp.le.s32.totalorder 1, %s21
      %p245 = scmp.lt.s32.totalorder %s21, 3
      %p246 = pnand %p244, %p245
      %p247 = pneg %p246
      // Predicated region
      $region9: #{tpu_custom_call.1} parent=5 // pred_check
        _
      $region10: #{tpu_custom_call.1} parent=5 // pred_check_branch
        %249 = sbr.rel (%p246) target = $region12
      $region11: #{tpu_custom_call.1} parent=5 // pred_region
        %s250 = ssub.s32 %s21, 1
        // Predicated region
        $region13: #{tpu_custom_call.1} parent=11 // pred_check
          %p251 = pneg %p82
        $region14: #{tpu_custom_call.1} parent=11 // pred_check_branch
          %253 = sbr.rel (%p251) target = $region16
        $region15: #{tpu_custom_call.1} parent=11 // pred_region
          %s255 = ssub.s32 64, 64
          %256 = vsyncadd [#allocation13], %s255
          %s258 = sshll.u32 [#allocation12], 4
          %s259 = int_to_ptr.vmem [resolvable:$true] %s258
          %261 = dma.hbm_to_vmem [thread:$0]  %s2, 64, %s259, [#allocation13]
        $region16: #{tpu_custom_call.1} parent=11 // pred_fallthru
          _
        // Predicated region
        $region17: #{tpu_custom_call.1} parent=11 // pred_check
          %p262 = pneg %p103
        $region18: #{tpu_custom_call.1} parent=11 // pred_check_branch
          %264 = sbr.rel (%p262) target = $region20
        $region19: #{tpu_custom_call.1} parent=11 // pred_region
          _
        $region20: #{tpu_custom_call.1} parent=11 // pred_fallthru
          _
        // Predicated region
        $region21: #{tpu_custom_call.1} parent=11 // pred_check
          %p265 = pneg %p124
        $region22: #{tpu_custom_call.1} parent=11 // pred_check_branch
          %267 = sbr.rel (%p265) target = $region24
        $region23: #{tpu_custom_call.1} parent=11 // pred_region
          _
        $region24: #{tpu_custom_call.1} parent=11 // pred_fallthru
          _
        // Predicated region
        $region25: #{tpu_custom_call.1} parent=11 // pred_check
          %p268 = pneg %p145
        $region26: #{tpu_custom_call.1} parent=11 // pred_check_branch
          %270 = sbr.rel (%p268) target = $region28
        $region27: #{tpu_custom_call.1} parent=11 // pred_region
          _
        $region28: #{tpu_custom_call.1} parent=11 // pred_fallthru
          _
        // Predicated region
        $region29: #{tpu_custom_call.1} parent=11 // pred_check
          %p271 = pneg %p166
        $region30: #{tpu_custom_call.1} parent=11 // pred_check_branch
          %273 = sbr.rel (%p271) target = $region32
        $region31: #{tpu_custom_call.1} parent=11 // pred_region
          _
        $region32: #{tpu_custom_call.1} parent=11 // pred_fallthru
          _
        // Predicated region
        $region33: #{tpu_custom_call.1} parent=11 // pred_check
          %p274 = pneg %p187
        $region34: #{tpu_custom_call.1} parent=11 // pred_check_branch
          %276 = sbr.rel (%p274) target = $region36
        $region35: #{tpu_custom_call.1} parent=11 // pred_region
          %s278 = ssub.s32 256, 256
          %279 = vsyncadd [#allocation16], %s278
          %s280 = sshll.u32 [#allocation15], 4
          %s281 = int_to_ptr.vmem [resolvable:$true] %s280
          %286 = dma.hbm_to_vmem [thread:$0]  %s7, 256, %s281, [#allocation16], 128, 128, 8
        $region36: #{tpu_custom_call.1} parent=11 // pred_fallthru
          _
        // Predicated region
        $region37: #{tpu_custom_call.1} parent=11 // pred_check
          %p287 = pneg %p208
        $region38: #{tpu_custom_call.1} parent=11 // pred_check_branch
          %289 = sbr.rel (%p287) target = $region40
        $region39: #{tpu_custom_call.1} parent=11 // pred_region
          %s291 = ssub.s32 16, 16
          %292 = vsyncadd [#allocation16], %s291
          %s294 = sshll.u32 [#allocation17], 4
          %s295 = int_to_ptr.vmem [resolvable:$true] %s294
          %297 = dma.hbm_to_vmem [thread:$0]  %s8, 16, %s295, [#allocation16]
        $region40: #{tpu_custom_call.1} parent=11 // pred_fallthru
          _
      $region12: #{tpu_custom_call.1} parent=5 // pred_fallthru
        _
      %p298 = scmp.lt.s32.totalorder %s21, 2
      // Predicated region
      $region41: #{tpu_custom_call.1} parent=5 // pred_check
        %p299 = pneg %p298
      $region42: #{tpu_custom_call.1} parent=5 // pred_check_branch
        %301 = sbr.rel (%p299) target = $region44
      $region43: #{tpu_custom_call.1} parent=5 // pred_region
        // Predicated region
        $region45: #{tpu_custom_call.1} parent=43 // pred_check
          %p302 = pneg %p55
        $region46: #{tpu_custom_call.1} parent=43 // pred_check_branch
          %304 = sbr.rel (%p302) target = $region48
        $region47: #{tpu_custom_call.1} parent=43 // pred_region
          %s305 = smul.u32 4, %s29
          %p306 = scmp.lt.s32.totalorder %s28, 1
          %s307 = scalar_select %p306, %s28, 1
          %p308 = scmp.lt.s32.totalorder %s305, 3
          %s309 = scalar_select %p308, %s305, 3
          %s310 = smul.addr %s307, 4
          %s311 = sadd.s32 %s309, %s310
          %s312 = smul.addr %s311, 4
          %s313 = scalar_lea.vmem %s0, %s312
          %s314 = smul.u32 4, %s29
        $region48: #{tpu_custom_call.1} parent=43 // pred_fallthru
          _
      $region44: #{tpu_custom_call.1} parent=5 // pred_fallthru
        _
      %p315 = scmp.le.s32.totalorder 1, %s21
      %p316 = scmp.lt.s32.totalorder %s21, 3
      %p317 = pnand %p315, %p316
      %p318 = pneg %p317
      // Predicated region
      $region49: #{tpu_custom_call.1} parent=5 // pred_check
        _
      $region50: #{tpu_custom_call.1} parent=5 // pred_check_branch
        %320 = sbr.rel (%p317) target = $region52
      $region51: #{tpu_custom_call.1} parent=5 // pred_region
        %s321 = ssub.s32 %s21, 1
        // Predicated region
        $region53: #{tpu_custom_call.1} parent=51 // pred_check
          %p322 = pneg %p82
        $region54: #{tpu_custom_call.1} parent=51 // pred_check_branch
          %324 = sbr.rel (%p322) target = $region56
        $region55: #{tpu_custom_call.1} parent=51 // pred_region
          %325 = dma.done [#allocation13], 64
        $region56: #{tpu_custom_call.1} parent=51 // pred_fallthru
          _
        // Predicated region
        $region57: #{tpu_custom_call.1} parent=51 // pred_check
          %p326 = pneg %p187
        $region58: #{tpu_custom_call.1} parent=51 // pred_check_branch
          %328 = sbr.rel (%p326) target = $region60
        $region59: #{tpu_custom_call.1} parent=51 // pred_region
          %329 = dma.done [#allocation16], 256
        $region60: #{tpu_custom_call.1} parent=51 // pred_fallthru
          _
        // Predicated region
        $region61: #{tpu_custom_call.1} parent=51 // pred_check
          %p330 = pneg %p208
        $region62: #{tpu_custom_call.1} parent=51 // pred_check_branch
          %332 = sbr.rel (%p330) target = $region64
        $region63: #{tpu_custom_call.1} parent=51 // pred_region
          %333 = dma.done [#allocation16], 16
        $region64: #{tpu_custom_call.1} parent=51 // pred_fallthru
          _
        %s334 = smul.u32 4, %s31
        %p335 = scmp.lt.s32.totalorder %s30, 1
        %s336 = scalar_select %p335, %s30, 1
        %p337 = scmp.lt.s32.totalorder %s334, 3
        %s338 = scalar_select %p337, %s334, 3
        %s339 = smul.addr %s336, 4
        %s340 = sadd.s32 %s338, %s339
        %s341 = smul.addr %s340, 4
        %s342 = scalar_lea.vmem %s0, %s341
        %p343 = pneg %p61
        %p344 = pneg %p58
        %p345 = pneg %p82
        %p346 = pneg %p79
        %p347 = pneg %p103
        %p348 = pneg %p100
        %p349 = pneg %p124
        %p350 = pneg %p121
        %p351 = pneg %p145
        %p352 = pneg %p142
        %p353 = pneg %p166
        %p354 = pneg %p163
        %p355 = pneg %p187
        %p356 = pneg %p184
        %p357 = pneg %p208
        %p358 = pneg %p205
        %p359 = pneg %p236
        %p360 = pneg %p233
        %s361 = sand.u32 %s223, 1
        %s362 = scalar_lea.sflag [#allocation14], %s361
        %s363 = sand.u32 %s223, 1
        %s364 = smul.addr %s363, 32
        %s365 = scalar_lea.vmem [#allocation18], %s364
        %s366 = smul.u32 4, %s31
        %p367 = scmp.lt.s32.totalorder %s30, 1
        %s368 = scalar_select %p367, %s30, 1
        %p369 = scmp.lt.s32.totalorder %s366, 3
        %s370 = scalar_select %p369, %s366, 3
        %s371 = smul.addr %s368, 4
        %s372 = sadd.s32 %s370, %s371
        %s373 = smul.addr %s372, 4
        %s374 = scalar_lea.vmem %s0, %s373
        %s375 = smul.u32 4, %s31
        %s376 = smul.u32 4, %s31
        %p378 = scmp.eq.s32.totalorder %s31, 0
        // Predicated region
        $region65: #{tpu_custom_call.1} parent=51 // pred_check
          %p379 = pneg %p378
        $region66: #{tpu_custom_call.1} parent=51 // pred_check_branch
          %381 = sbr.rel (%p379) target = $region68
        $region67: #{tpu_custom_call.1} parent=51 // pred_region
          %vm382 = vcmask 523264
          %383 = vst.msk [vmem:[#allocation5] sm:$0xff] %vm382, 0.0
          %384 = vst.msk [vmem:[#allocation5 + $0x8] sm:$0xff] %vm382, 0.0
          %vm385 = vcmask 518144
          %386 = vst.msk [vmem:[#allocation6] sm:$0x7] %vm385, 0.0
          // Predicated region
          $region69: #{tpu_custom_call.1} parent=67 // pred_check
            _
          $region70: #{tpu_custom_call.1} parent=67 // pred_check_branch
            %388 = sbr.rel target = $region72
          $region71: #{tpu_custom_call.1} parent=67 // pred_region
            %389 = sst [smem:[#allocation21]] [#allocation20]
            %390 = sst [smem:[#allocation22]] [#allocation19]
          $region72: #{tpu_custom_call.1} parent=67 // pred_fallthru
            _
          %392 = shalt.err (0)
          %s394 = sshll.u32 [#allocation2], 4
          %s395 = int_to_ptr.vmem [resolvable:$true] %s394
          %397 = dma.hbm_to_vmem [thread:$0]  %s1, 256, %s395, [#allocation4]
          %s398 = scalar_lea.sflag [#allocation4], 1
          %p400 = scmp.lt.u32.totalorder 32, 8
          %p401 = pneg %p400
          // Predicated region
          $region73: #{tpu_custom_call.1} parent=67 // pred_check
            _
          $region74: #{tpu_custom_call.1} parent=67 // pred_check_branch
            %403 = sbr.rel (%p400) target = $region76
          $region75: #{tpu_custom_call.1} parent=67 // pred_region
            %s418 = sand.u32 32, 7
            %p419 = scmp.eq.s32.totalorder %s418, 0
            // Predicated region
            $region88: #{tpu_custom_call.1} parent=75 // pred_check
              %p420 = pneg %p419
            $region89: #{tpu_custom_call.1} parent=75 // pred_check_branch
              %422 = sbr.rel (%p420) target = $region91
            $region90: #{tpu_custom_call.1} parent=75 // pred_region
              loop: start=0, step=1, limit=1
              $region92: #{tpu_custom_call.1} parent=90 // loop_pre_header
                _
              $region93: #{tpu_custom_call.1} parent=90 // loop_header
                %s424 = sphi 0, %s428
                %p425 = scmp.ge.s32.totalorder %s424, 1
                %s429 = sphi %s9, %s9
                %s430 = sphi [#allocation3], [#allocation3]
              $region94: #{tpu_custom_call.1} parent=90 // loop_header_branch
                %427 = sbr.rel (%p425) target = $region98
              $region95: #{tpu_custom_call.1} parent=90 // loop_body
                %v431 = vld [vmem:[%s429] sm:$0xff]
                %432 = vst [vmem:[%s430] sm:$0xff] %v431
                %v433 = vld [vmem:[%s429 + $0x8] sm:$0xff]
                %434 = vst [vmem:[%s430 + $0x8] sm:$0xff] %v433
                %v435 = vld [vmem:[%s429 + $0x10] sm:$0xff]
                %436 = vst [vmem:[%s430 + $0x10] sm:$0xff] %v435
                %v437 = vld [vmem:[%s429 + $0x18] sm:$0xff]
                %438 = vst [vmem:[%s430 + $0x18] sm:$0xff] %v437
              $region96: #{tpu_custom_call.1} parent=90 // loop_footer
                %s428 = sadd.s32 1, %s424
              $region97: #{tpu_custom_call.1} parent=90 // loop_footer_branch
                %423 = sbr.rel target = $region93
              $region98: #{tpu_custom_call.1} parent=90 // loop_exit
                _
            $region91: #{tpu_custom_call.1} parent=75 // pred_fallthru
              _
            %p439 = pneg %p419
            // Predicated region
            $region99: #{tpu_custom_call.1} parent=75 // pred_check
              _
            $region100: #{tpu_custom_call.1} parent=75 // pred_check_branch
              %441 = sbr.rel (%p419) target = $region102
            $region101: #{tpu_custom_call.1} parent=75 // pred_region
              %s442 = sand.u32 32, 7
            $region102: #{tpu_custom_call.1} parent=75 // pred_fallthru
              _
          $region76: #{tpu_custom_call.1} parent=67 // pred_fallthru
            _
          // Predicated region
          $region77: #{tpu_custom_call.1} parent=67 // pred_check
            %p404 = pneg %p400
          $region78: #{tpu_custom_call.1} parent=67 // pred_check_branch
            %406 = sbr.rel (%p404) target = $region80
          $region79: #{tpu_custom_call.1} parent=67 // pred_region
            %s407 = sshllo.u32 0, 32
            loop: start=0, step=1, limit=1
            $region81: #{tpu_custom_call.1} parent=79 // loop_pre_header
              _
            $region82: #{tpu_custom_call.1} parent=79 // loop_header
              %s409 = sphi 0, %s413
              %p410 = scmp.ge.s32.totalorder %s409, 1
              %s414 = sphi %s9, %s9
              %s415 = sphi [#allocation3], [#allocation3]
            $region83: #{tpu_custom_call.1} parent=79 // loop_header_branch
              %412 = sbr.rel (%p410) target = $region87
            $region84: #{tpu_custom_call.1} parent=79 // loop_body
              %v416 = vld [vmem:[%s414] sm:%s407]
              %417 = vst [vmem:[%s415] sm:%s407] %v416
            $region85: #{tpu_custom_call.1} parent=79 // loop_footer
              %s413 = sadd.s32 1, %s409
            $region86: #{tpu_custom_call.1} parent=79 // loop_footer_branch
              %408 = sbr.rel target = $region82
            $region87: #{tpu_custom_call.1} parent=79 // loop_exit
              _
          $region80: #{tpu_custom_call.1} parent=67 // pred_fallthru
            _
          // Predicated region
          $region103: #{tpu_custom_call.1} parent=67 // pred_check
            _
          $region104: #{tpu_custom_call.1} parent=67 // pred_check_branch
            %445 = sbr.rel (0) target = $region106
          $region105: #{tpu_custom_call.1} parent=67 // pred_region
            %446 = vsyncadd %s398, 512
          $region106: #{tpu_custom_call.1} parent=67 // pred_fallthru
            _
          %s447 = smul.u32 4, 4
          %s448 = smul.u32 %s447, 1
          %s449 = sshll.u32 %s448, 4
          %450 = dma.done [#allocation4], %s449
          %s451 = smul.u32 4, 8
          %s452 = smul.u32 %s451, 1
          %s453 = sshll.u32 %s452, 4
          %454 = dma.done %s398, %s453
        $region68: #{tpu_custom_call.1} parent=51 // pred_fallthru
          _
        %v455 = vld [vmem:[%s374] sm:$0xf]
        %v456 = vld [vmem:[%s374 + $0x4] sm:$0xf]
        %v457 = vld [vmem:[%s374 + $0x8] sm:$0xf]
        %v458 = vld [vmem:[%s374 + $0xc] sm:$0xf]
        %v459 = vld [vmem:[#allocation2] sm:$0xff]
        %v460 = vld [vmem:[#allocation2 + $0x8] sm:$0xff]
        %v465 = vunpack.c.l.b16 %v455
        %v466 = vunpack.c.l.b16 %v456
        %v467 = vunpack.c.l.b16 %v457
        %v468 = vunpack.c.l.b16 %v458
        %v469 = vpack.c.b16 %v466, %v465
        %v470 = vpack.c.b16 %v468, %v467
        %vm471 = vcmask 261120
        %v473 = vsel %vm471, %v469, 0
        %v476 = vsel %vm471, %v470, 0
        %478 = vmatprep.subr.bf16.mxu0 0
        %479 = vmatpush1.bf16.msra.mxu0 %v459
        %480 = vmatprep.subr.bf16.mxu0 0
        %481 = vmatpush1.bf16.msra.mxu0 %v460
        %482 = vmatprep.subr.bf16.mxu0 0
        %483 = vmatpush1.bf16.msra.mxu0 0
        %484 = vmatprep.subr.bf16.mxu0 0
        %485 = vmatpush1.bf16.msra.mxu0 0
        %486 = vmatprep.subr.bf16.mxu0 0
        %487 = vmatpush1.bf16.msra.mxu0 0
        %488 = vmatprep.subr.bf16.mxu0 0
        %489 = vmatpush1.bf16.msra.mxu0 0
        %490 = vmatprep.subr.bf16.mxu0 0
        %491 = vmatpush1.bf16.msra.mxu0 0
        %492 = vmatprep.subr.bf16.mxu0 0
        %493 = vmatpush1.bf16.msra.mxu0 0
        %494 = vmatprep.subr.bf16.mxu0 0
        %495 = vmatpush1.bf16.msra.mxu0 0
        %496 = vmatprep.subr.bf16.mxu0 0
        %497 = vmatpush1.bf16.msra.mxu0 0
        %498 = vmatprep.subr.bf16.mxu0 0
        %499 = vmatpush1.bf16.msra.mxu0 0
        %500 = vmatprep.subr.bf16.mxu0 0
        %501 = vmatpush1.bf16.msra.mxu0 0
        %502 = vmatprep.subr.bf16.mxu0 0
        %503 = vmatpush1.bf16.msra.mxu0 0
        %504 = vmatprep.subr.bf16.mxu0 0
        %505 = vmatpush1.bf16.msra.mxu0 0
        %506 = vmatprep.subr.bf16.mxu0 0
        %507 = vmatpush1.bf16.msra.mxu0 0
        %508 = vmatprep.subr.bf16.mxu0 0
        %509 = vmatpush1.bf16.msra.mxu0 0
        %510 = vmatprep.mubr.bf16.mxu0 0
        %511 = vmatmul.mubr.bf16.gmra.mrb[0].mxu0 %v473
        %v512 = vpop.f32.mrb[0].mxu0
        %v513 = vadd.f32 0.0, %v512
        %v514 = vpop.f32.mrb[0].mxu0
        %v515 = vpop.f32.mrb[0].mxu0
        %v516 = vadd.f32 0.0, %v515
        %v517 = vpop.f32.mrb[0].mxu0
        %518 = vmatprep.mubr.bf16.mxu0 0
        %519 = vmatmul.mubr.bf16.gmra.mrb[0].mxu0 %v476
        %v520 = vpop.f32.mrb[0].mxu0
        %v521 = vadd.f32 0.0, %v520
        %v522 = vpop.f32.mrb[0].mxu0
        %v523 = vpop.f32.mrb[0].mxu0
        %v524 = vadd.f32 0.0, %v523
        %v525 = vpop.f32.mrb[0].mxu0
        %526 = vdwg.mxu0
        %v527 = vld [vmem:[#allocation12] sm:$0xf]
        %v528 = vld [vmem:[#allocation6] sm:$0x7]
        %vm533 = vcmask 1042432
        %v534 = vrot.slane %v513, 5
        %v535 = vrot.slane %v516, 5
        %v536 = vsel %vm533, %v534, %v535
        %v537 = vrot.slane %v521, 5
        %v538 = vsel %vm533, %v535, %v537
        %v539 = vrot.slane %v524, 5
        %v540 = vsel %vm533, %v537, %v539
        %v546 = vsel %vm533, %v528, %v534
        %vm547 = vcmask 518144
        %548 = vst.msk [vmem:[#allocation6] sm:$0x7] %vm547, %v539
        %v549 = vlaneseq
        %v550 = vshrl.u32 %v549, 7
        %v551 = vsub.s32 0, %v550
        %v552 = vrot.slane %v527, %v551
        %v553 = vmul.f32 %v546, %v552
        %v554 = vmul.f32 %v536, %v552
        %v555 = vmul.f32 %v538, %v552
        %v556 = vmul.f32 %v540, %v552
        %v557 = vadd.f32 %v553, 0.0
        %v558 = vadd.f32 %v554, 0.0
        %v559 = vadd.f32 %v555, 0.0
        %v560 = vadd.f32 %v556, 0.0
        %v561 = vlaneseq
        %v562 = vshrl.u32 %v561, 7
        %v563 = vsub.s32 1, %v562
        %v564 = vrot.slane %v527, %v563
        %v565 = vmul.f32 %v546, %v564
        %v566 = vmul.f32 %v536, %v564
        %v567 = vmul.f32 %v538, %v564
        %v568 = vmul.f32 %v540, %v564
        %v569 = vmul.f32 %v539, %v564
        %vm575 = vcmask 1046528
        %v576 = vrot.slane %v565, 1
        %v577 = vrot.slane %v566, 1
        %v578 = vsel %vm575, %v576, %v577
        %v579 = vrot.slane %v567, 1
        %v580 = vsel %vm575, %v577, %v579
        %v581 = vrot.slane %v568, 1
        %v582 = vsel %vm575, %v579, %v581
        %v583 = vrot.slane %v569, 1
        %v584 = vsel %vm575, %v581, %v583
        %v589 = vadd.f32 %v557, %v578
        %v590 = vadd.f32 %v558, %v580
        %v591 = vadd.f32 %v559, %v582
        %v592 = vadd.f32 %v560, %v584
        %v593 = vlaneseq
        %v594 = vshrl.u32 %v593, 7
        %v595 = vsub.s32 2, %v594
        %v596 = vrot.slane %v527, %v595
        %v597 = vmul.f32 %v546, %v596
        %v598 = vmul.f32 %v536, %v596
        %v599 = vmul.f32 %v538, %v596
        %v600 = vmul.f32 %v540, %v596
        %v601 = vmul.f32 %v539, %v596
        %vm607 = vcmask 1045504
        %v608 = vrot.slane %v597, 2
        %v609 = vrot.slane %v598, 2
        %v610 = vsel %vm607, %v608, %v609
        %v611 = vrot.slane %v599, 2
        %v612 = vsel %vm607, %v609, %v611
        %v613 = vrot.slane %v600, 2
        %v614 = vsel %vm607, %v611, %v613
        %v615 = vrot.slane %v601, 2
        %v616 = vsel %vm607, %v613, %v615
        %v621 = vadd.f32 %v589, %v610
        %v622 = vadd.f32 %v590, %v612
        %v623 = vadd.f32 %v591, %v614
        %v624 = vadd.f32 %v592, %v616
        %v625 = vlaneseq
        %v626 = vshrl.u32 %v625, 7
        %v627 = vsub.s32 3, %v626
        %v628 = vrot.slane %v527, %v627
        %v629 = vmul.f32 %v546, %v628
        %v630 = vmul.f32 %v536, %v628
        %v631 = vmul.f32 %v538, %v628
        %v632 = vmul.f32 %v540, %v628
        %v633 = vmul.f32 %v539, %v628
        %vm639 = vcmask 1044480
        %v640 = vrot.slane %v629, 3
        %v641 = vrot.slane %v630, 3
        %v642 = vsel %vm639, %v640, %v641
        %v643 = vrot.slane %v631, 3
        %v644 = vsel %vm639, %v641, %v643
        %v645 = vrot.slane %v632, 3
        %v646 = vsel %vm639, %v643, %v645
        %v647 = vrot.slane %v633, 3
        %v648 = vsel %vm639, %v645, %v647
        %v653 = vadd.f32 %v621, %v642
        %v654 = vadd.f32 %v622, %v644
        %v655 = vadd.f32 %v623, %v646
        %v656 = vadd.f32 %v624, %v648
        %v657 = vld [vmem:[%s3] sm:$0x1]
        %v659 = vlaneseq
        %v660 = vshrl.u32 %v659, 7
        %v661 = vsub.s32 0, %v660
        %v662 = vrot.slane %v657, %v661
        %v664 = vadd.f32 %v653, %v662
        %v665 = vadd.f32 %v654, %v662
        %v666 = vadd.f32 %v655, %v662
        %v667 = vadd.f32 %v656, %v662
        %v668 = vxor.u32 %v664, 2147483648
        %v669 = vxor.u32 %v665, 2147483648
        %v670 = vxor.u32 %v666, 2147483648
        %v671 = vxor.u32 %v667, 2147483648
        %v672 = vmul.f32 %v668, 1.442695
        %v673 = vpow.pop %v672
        %v674 = vmul.f32 %v669, 1.442695
        %v675 = vpow.pop %v674
        %v676 = vmul.f32 %v670, 1.442695
        %v677 = vpow.pop %v676
        %v678 = vmul.f32 %v671, 1.442695
        %v679 = vpow.pop %v678
        %v680 = vadd.f32 %v673, 1.0
        %v681 = vadd.f32 %v675, 1.0
        %v682 = vadd.f32 %v677, 1.0
        %v683 = vadd.f32 %v679, 1.0
        %v684 = vrcp.pop %v680
        %v685 = vmul.f32 1.0, %v684
        %v686 = vrcp.pop %v681
        %v687 = vmul.f32 1.0, %v686
        %v688 = vrcp.pop %v682
        %v689 = vmul.f32 1.0, %v688
        %v690 = vrcp.pop %v683
        %v691 = vmul.f32 1.0, %v690
        %v692 = vmul.f32 %v664, %v685
        %v693 = vmul.f32 %v665, %v687
        %v694 = vmul.f32 %v666, %v689
        %v695 = vmul.f32 %v667, %v691
        %v696 = vpack.c.bf16 %v693, %v692
        %v697 = vpack.c.bf16 %v695, %v694
        %v698 = vld [vmem:[%s4] sm:$0xff]
        %v699 = vld [vmem:[%s4 + $0x8] sm:$0xf]
        %v700 = vld [vmem:[%s4 + $0xc] sm:$0xff]
        %v701 = vld [vmem:[%s4 + $0x14] sm:$0xf]
        %v702 = vld [vmem:[%s4 + $0x18] sm:$0xff]
        %v703 = vld [vmem:[%s4 + $0x20] sm:$0xf]
        %v704 = vld [vmem:[%s4 + $0x24] sm:$0xff]
        %v705 = vld [vmem:[%s4 + $0x2c] sm:$0xf]
        %v706 = vld [vmem:[%s4 + $0x30] sm:$0xff]
        %v707 = vld [vmem:[%s4 + $0x38] sm:$0xf]
        %v708 = vld [vmem:[%s4 + $0x3c] sm:$0xff]
        %v709 = vld [vmem:[%s4 + $0x44] sm:$0xf]
        %v710 = vld [vmem:[%s4 + $0x48] sm:$0xff]
        %v711 = vld [vmem:[%s4 + $0x50] sm:$0xf]
        %v712 = vld [vmem:[%s4 + $0x54] sm:$0xff]
        %v713 = vld [vmem:[%s4 + $0x5c] sm:$0xf]
        %v730 = vunpack.c.l.b16 %v698
        %v731 = vunpack.c.h.b16 %v698
        %v732 = vunpack.c.l.b16 %v699
        %v733 = vunpack.c.l.b16 %v700
        %v734 = vunpack.c.h.b16 %v700
        %v735 = vunpack.c.l.b16 %v701
        %v736 = vunpack.c.l.b16 %v702
        %v737 = vunpack.c.h.b16 %v702
        %v738 = vunpack.c.l.b16 %v703
        %v739 = vunpack.c.l.b16 %v704
        %v740 = vunpack.c.h.b16 %v704
        %v741 = vunpack.c.l.b16 %v705
        %v742 = vunpack.c.l.b16 %v706
        %v743 = vunpack.c.h.b16 %v706
        %v744 = vunpack.c.l.b16 %v707
        %v745 = vunpack.c.l.b16 %v708
        %v746 = vunpack.c.h.b16 %v708
        %v747 = vunpack.c.l.b16 %v709
        %v748 = vunpack.c.l.b16 %v710
        %v749 = vunpack.c.h.b16 %v710
        %v750 = vunpack.c.l.b16 %v711
        %v751 = vunpack.c.l.b16 %v712
        %v752 = vunpack.c.h.b16 %v712
        %v753 = vunpack.c.l.b16 %v713
        %v754 = vpack.c.b16 %v733, %v730
        %v755 = vpack.c.b16 %v734, %v731
        %v756 = vpack.c.b16 %v735, %v732
        %v757 = vpack.c.b16 %v739, %v736
        %v758 = vpack.c.b16 %v740, %v737
        %v759 = vpack.c.b16 %v741, %v738
        %v760 = vpack.c.b16 %v745, %v742
        %v761 = vpack.c.b16 %v746, %v743
        %v762 = vpack.c.b16 %v747, %v744
        %v763 = vpack.c.b16 %v751, %v748
        %v764 = vpack.c.b16 %v752, %v749
        %v765 = vpack.c.b16 %v753, %v750
        %vm778 = vcmask 523264
        %v780 = vsel %vm778, %v696, 0
        %v783 = vsel %vm778, %v697, 0
        %785 = vmatprep.subr.bf16.mxu0 %v755
        %786 = vmatpush1.bf16.msra.mxu0 %v754
        %787 = vmatprep.subr.bf16.mxu0 %v758
        %788 = vmatpush1.bf16.msra.mxu0 %v757
        %789 = vmatprep.subr.bf16.mxu0 %v761
        %790 = vmatpush1.bf16.msra.mxu0 %v760
        %791 = vmatprep.subr.bf16.mxu0 %v764
        %792 = vmatpush1.bf16.msra.mxu0 %v763
        %793 = vmatprep.subr.bf16.mxu0 0
        %794 = vmatpush1.bf16.msra.mxu0 0
        %795 = vmatprep.subr.bf16.mxu0 0
        %796 = vmatpush1.bf16.msra.mxu0 0
        %797 = vmatprep.subr.bf16.mxu0 0
        %798 = vmatpush1.bf16.msra.mxu0 0
        %799 = vmatprep.subr.bf16.mxu0 0
        %800 = vmatpush1.bf16.msra.mxu0 0
        %801 = vmatprep.subr.bf16.mxu0 0
        %802 = vmatpush1.bf16.msra.mxu0 0
        %803 = vmatprep.subr.bf16.mxu0 0
        %804 = vmatpush1.bf16.msra.mxu0 0
        %805 = vmatprep.subr.bf16.mxu0 0
        %806 = vmatpush1.bf16.msra.mxu0 0
        %807 = vmatprep.subr.bf16.mxu0 0
        %808 = vmatpush1.bf16.msra.mxu0 0
        %809 = vmatprep.subr.bf16.mxu0 0
        %810 = vmatpush1.bf16.msra.mxu0 0
        %811 = vmatprep.subr.bf16.mxu0 0
        %812 = vmatpush1.bf16.msra.mxu0 0
        %813 = vmatprep.subr.bf16.mxu0 0
        %814 = vmatpush1.bf16.msra.mxu0 0
        %815 = vmatprep.subr.bf16.mxu0 0
        %816 = vmatpush1.bf16.msra.mxu0 0
        %817 = vmatprep.mubr.bf16.mxu0 0
        %818 = vmatmul.mubr.bf16.gmra.mrb[0].mxu0 %v780
        %v819 = vpop.f32.mrb[0].mxu0
        %v820 = vadd.f32 0.0, %v819
        %v821 = vpop.f32.mrb[0].mxu0
        %v822 = vadd.f32 0.0, %v821
        %v823 = vpop.f32.mrb[0].mxu0
        %v824 = vadd.f32 0.0, %v823
        %v825 = vpop.f32.mrb[0].mxu0
        %v826 = vadd.f32 0.0, %v825
        %827 = vmatprep.mubr.bf16.mxu0 0
        %828 = vmatmul.mubr.bf16.gmra.mrb[0].mxu0 %v783
        %v829 = vpop.f32.mrb[0].mxu0
        %v830 = vadd.f32 0.0, %v829
        %v831 = vpop.f32.mrb[0].mxu0
        %v832 = vadd.f32 0.0, %v831
        %v833 = vpop.f32.mrb[0].mxu0
        %v834 = vadd.f32 0.0, %v833
        %v835 = vpop.f32.mrb[0].mxu0
        %v836 = vadd.f32 0.0, %v835
        %837 = vdwg.mxu0
        %838 = vmatprep.subr.bf16.mxu0 0
        %839 = vmatpush1.bf16.msra.mxu0 %v756
        %840 = vmatprep.subr.bf16.mxu0 0
        %841 = vmatpush1.bf16.msra.mxu0 %v759
        %842 = vmatprep.subr.bf16.mxu0 0
        %843 = vmatpush1.bf16.msra.mxu0 %v762
        %844 = vmatprep.subr.bf16.mxu0 0
        %845 = vmatpush1.bf16.msra.mxu0 %v765
        %846 = vmatprep.subr.bf16.mxu0 0
        %847 = vmatpush1.bf16.msra.mxu0 0
        %848 = vmatprep.subr.bf16.mxu0 0
        %849 = vmatpush1.bf16.msra.mxu0 0
        %850 = vmatprep.subr.bf16.mxu0 0
        %851 = vmatpush1.bf16.msra.mxu0 0
        %852 = vmatprep.subr.bf16.mxu0 0
        %853 = vmatpush1.bf16.msra.mxu0 0
        %854 = vmatprep.subr.bf16.mxu0 0
        %855 = vmatpush1.bf16.msra.mxu0 0
        %856 = vmatprep.subr.bf16.mxu0 0
        %857 = vmatpush1.bf16.msra.mxu0 0
        %858 = vmatprep.subr.bf16.mxu0 0
        %859 = vmatpush1.bf16.msra.mxu0 0
        %860 = vmatprep.subr.bf16.mxu0 0
        %861 = vmatpush1.bf16.msra.mxu0 0
        %862 = vmatprep.subr.bf16.mxu0 0
        %863 = vmatpush1.bf16.msra.mxu0 0
        %864 = vmatprep.subr.bf16.mxu0 0
        %865 = vmatpush1.bf16.msra.mxu0 0
        %866 = vmatprep.subr.bf16.mxu0 0
        %867 = vmatpush1.bf16.msra.mxu0 0
        %868 = vmatprep.subr.bf16.mxu0 0
        %869 = vmatpush1.bf16.msra.mxu0 0
        %870 = vmatprep.mubr.bf16.mxu0 0
        %871 = vmatmul.mubr.bf16.gmra.mrb[0].mxu0 %v780
        %v872 = vpop.f32.mrb[0].mxu0
        %v873 = vadd.f32 0.0, %v872
        %v874 = vpop.f32.mrb[0].mxu0
        %v875 = vpop.f32.mrb[0].mxu0
        %v876 = vadd.f32 0.0, %v875
        %v877 = vpop.f32.mrb[0].mxu0
        %878 = vmatprep.mubr.bf16.mxu0 0
        %879 = vmatmul.mubr.bf16.gmra.mrb[0].mxu0 %v783
        %v880 = vpop.f32.mrb[0].mxu0
        %v881 = vadd.f32 0.0, %v880
        %v882 = vpop.f32.mrb[0].mxu0
        %v883 = vpop.f32.mrb[0].mxu0
        %v884 = vadd.f32 0.0, %v883
        %v885 = vpop.f32.mrb[0].mxu0
        %886 = vdwg.mxu0
        %vm887 = vcmask 130048
        %888 = vst.msk [vmem:[#allocation9] sm:$0xff] %vm887, %v822
        %889 = vst.msk [vmem:[#allocation9 + $0x8] sm:$0xff] %vm887, %v826
        %890 = vst.msk [vmem:[#allocation9 + $0x10] sm:$0xff] %vm887, %v832
        %891 = vst.msk [vmem:[#allocation9 + $0x18] sm:$0xff] %vm887, %v836
        %892 = vst.msk [vmem:[#allocation10] sm:$0xff] %vm887, %v873
        %893 = vst.msk [vmem:[#allocation10 + $0x8] sm:$0xff] %vm887, %v876
        %894 = vst.msk [vmem:[#allocation10 + $0x10] sm:$0xff] %vm887, %v881
        %895 = vst.msk [vmem:[#allocation10 + $0x18] sm:$0xff] %vm887, %v884
        %v896 = vpack.c.bf16 %v824, %v820
        %v897 = vpack.c.bf16 %v834, %v830
        %v898 = vld [vmem:[%s5] sm:$0xf]
        %v899 = vld [vmem:[%s5 + $0x4] sm:$0xf]
        %v900 = vld [vmem:[%s5 + $0x8] sm:$0xf]
        %v901 = vld [vmem:[%s5 + $0xc] sm:$0xf]
        %v902 = vld [vmem:[%s5 + $0x10] sm:$0xf]
        %v903 = vld [vmem:[%s5 + $0x14] sm:$0xf]
        %v904 = vld [vmem:[%s5 + $0x18] sm:$0xf]
        %v905 = vld [vmem:[%s5 + $0x1c] sm:$0xf]
        %v906 = vld [vmem:[%s5 + $0x20] sm:$0xf]
        %v907 = vld [vmem:[%s5 + $0x24] sm:$0xf]
        %v908 = vld [vmem:[%s5 + $0x28] sm:$0xf]
        %v909 = vld [vmem:[%s5 + $0x2c] sm:$0xf]
        %v910 = vld [vmem:[%s5 + $0x30] sm:$0xf]
        %v911 = vld [vmem:[%s5 + $0x34] sm:$0xf]
        %v912 = vld [vmem:[%s5 + $0x38] sm:$0xf]
        %v913 = vld [vmem:[%s5 + $0x3c] sm:$0xf]
        %v914 = vld [vmem:[%s6] sm:$0x1]
        %v916 = vlaneseq
        %v917 = vshrl.u32 %v916, 7
        %v918 = vsub.s32 0, %v917
        %v919 = vrot.slane %v914, %v918
        %v937 = vunpack.c.l.b16 %v898
        %v938 = vunpack.c.l.b16 %v899
        %v939 = vunpack.c.l.b16 %v900
        %v940 = vunpack.c.l.b16 %v901
        %v941 = vunpack.c.l.b16 %v902
        %v942 = vunpack.c.l.b16 %v903
        %v943 = vunpack.c.l.b16 %v904
        %v944 = vunpack.c.l.b16 %v905
        %v945 = vunpack.c.l.b16 %v906
        %v946 = vunpack.c.l.b16 %v907
        %v947 = vunpack.c.l.b16 %v908
        %v948 = vunpack.c.l.b16 %v909
        %v949 = vunpack.c.l.b16 %v910
        %v950 = vunpack.c.l.b16 %v911
        %v951 = vunpack.c.l.b16 %v912
        %v952 = vunpack.c.l.b16 %v913
        %v953 = vpack.c.b16 %v938, %v937
        %v954 = vpack.c.b16 %v940, %v939
        %v955 = vpack.c.b16 %v942, %v941
        %v956 = vpack.c.b16 %v944, %v943
        %v957 = vpack.c.b16 %v946, %v945
        %v958 = vpack.c.b16 %v948, %v947
        %v959 = vpack.c.b16 %v950, %v949
        %v960 = vpack.c.b16 %v952, %v951
        %969 = vmatprep.subr.bf16.mxu0 0
        %970 = vmatpush1.bf16.msra.mxu0 %v953
        %971 = vmatprep.subr.bf16.mxu0 0
        %972 = vmatpush1.bf16.msra.mxu0 %v954
        %973 = vmatprep.subr.bf16.mxu0 0
        %974 = vmatpush1.bf16.msra.mxu0 %v955
        %975 = vmatprep.subr.bf16.mxu0 0
        %976 = vmatpush1.bf16.msra.mxu0 %v956
        %977 = vmatprep.subr.bf16.mxu0 0
        %978 = vmatpush1.bf16.msra.mxu0 %v957
        %979 = vmatprep.subr.bf16.mxu0 0
        %980 = vmatpush1.bf16.msra.mxu0 %v958
        %981 = vmatprep.subr.bf16.mxu0 0
        %982 = vmatpush1.bf16.msra.mxu0 %v959
        %983 = vmatprep.subr.bf16.mxu0 0
        %984 = vmatpush1.bf16.msra.mxu0 %v960
        %985 = vmatprep.subr.bf16.mxu0 0
        %986 = vmatpush1.bf16.msra.mxu0 0
        %987 = vmatprep.subr.bf16.mxu0 0
        %988 = vmatpush1.bf16.msra.mxu0 0
        %989 = vmatprep.subr.bf16.mxu0 0
        %990 = vmatpush1.bf16.msra.mxu0 0
        %991 = vmatprep.subr.bf16.mxu0 0
        %992 = vmatpush1.bf16.msra.mxu0 0
        %993 = vmatprep.subr.bf16.mxu0 0
        %994 = vmatpush1.bf16.msra.mxu0 0
        %995 = vmatprep.subr.bf16.mxu0 0
        %996 = vmatpush1.bf16.msra.mxu0 0
        %997 = vmatprep.subr.bf16.mxu0 0
        %998 = vmatpush1.bf16.msra.mxu0 0
        %999 = vmatprep.subr.bf16.mxu0 0
        %1000 = vmatpush1.bf16.msra.mxu0 0
        %1001 = vmatprep.mubr.bf16.mxu0 0
        %1002 = vmatmul.mubr.bf16.gmra.mrb[0].mxu0 %v896
        %v1003 = vpop.f32.mrb[0].mxu0
        %v1004 = vadd.f32 %v919, %v1003
        %v1005 = vpop.f32.mrb[0].mxu0
        %v1006 = vpop.f32.mrb[0].mxu0
        %v1007 = vadd.f32 %v919, %v1006
        %v1008 = vpop.f32.mrb[0].mxu0
        %1009 = vmatprep.mubr.bf16.mxu0 0
        %1010 = vmatmul.mubr.bf16.gmra.mrb[0].mxu0 %v897
        %v1011 = vpop.f32.mrb[0].mxu0
        %v1012 = vadd.f32 %v919, %v1011
        %v1013 = vpop.f32.mrb[0].mxu0
        %v1014 = vpop.f32.mrb[0].mxu0
        %v1015 = vadd.f32 %v919, %v1014
        %v1016 = vpop.f32.mrb[0].mxu0
        %1017 = vdwg.mxu0
        %v1018 = vmax.f32 %v1004, 0.0
        %v1019 = vmax.f32 %v1007, 0.0
        %v1020 = vmax.f32 %v1012, 0.0
        %v1021 = vmax.f32 %v1015, 0.0
        %vm1022 = vcmp.ne.f32.partialorder %v1004, %v1004
        %vm1023 = vcmp.ne.f32.partialorder %v1007, %v1007
        %vm1024 = vcmp.ne.f32.partialorder %v1012, %v1012
        %vm1025 = vcmp.ne.f32.partialorder %v1015, %v1015
        %v1026 = vadd.f32 %v1004, 0.0
        %v1027 = vadd.f32 %v1007, 0.0
        %v1028 = vadd.f32 %v1012, 0.0
        %v1029 = vadd.f32 %v1015, 0.0
        %v1030 = vand.u32 2147483647, %v1004
        %v1031 = vand.u32 2147483647, %v1007
        %v1032 = vand.u32 2147483647, %v1012
        %v1033 = vand.u32 2147483647, %v1015
        %v1034 = vsub.f32 0.0, %v1030
        %v1035 = vsub.f32 0.0, %v1031
        %v1036 = vsub.f32 0.0, %v1032
        %v1037 = vsub.f32 0.0, %v1033
        %v1038 = vmul.f32 %v1034, 1.442695
        %v1039 = vpow.pop %v1038
        %v1040 = vmul.f32 %v1035, 1.442695
        %v1041 = vpow.pop %v1040
        %v1042 = vmul.f32 %v1036, 1.442695
        %v1043 = vpow.pop %v1042
        %v1044 = vmul.f32 %v1037, 1.442695
        %v1045 = vpow.pop %v1044
        %v1046 = vadd.f32 %v1039, 1.0
        %v1047 = vlog2.pop %v1046
        %v1048 = vmul.f32 %v1047, 0.6931472
        %v1049 = vmul.f32 -0.5, %v1039
        %v1050 = vadd.f32 %v1049, 1.0
        %v1051 = vmul.f32 %v1050, %v1039
        %v1052 = vand.u32 2147483647, %v1039
        %vm1053 = vcmp.lt.f32.partialorder %v1052, 0.0004427343
        %v1054 = vsel %vm1053, %v1051, %v1048
        %v1055 = vadd.f32 %v1041, 1.0
        %v1056 = vlog2.pop %v1055
        %v1057 = vmul.f32 %v1056, 0.6931472
        %v1058 = vmul.f32 -0.5, %v1041
        %v1059 = vadd.f32 %v1058, 1.0
        %v1060 = vmul.f32 %v1059, %v1041
        %v1061 = vand.u32 2147483647, %v1041
        %vm1062 = vcmp.lt.f32.partialorder %v1061, 0.0004427343
        %v1063 = vsel %vm1062, %v1060, %v1057
        %v1064 = vadd.f32 %v1043, 1.0
        %v1065 = vlog2.pop %v1064
        %v1066 = vmul.f32 %v1065, 0.6931472
        %v1067 = vmul.f32 -0.5, %v1043
        %v1068 = vadd.f32 %v1067, 1.0
        %v1069 = vmul.f32 %v1068, %v1043
        %v1070 = vand.u32 2147483647, %v1043
        %vm1071 = vcmp.lt.f32.partialorder %v1070, 0.0004427343
        %v1072 = vsel %vm1071, %v1069, %v1066
        %v1073 = vadd.f32 %v1045, 1.0
        %v1074 = vlog2.pop %v1073
        %v1075 = vmul.f32 %v1074, 0.6931472
        %v1076 = vmul.f32 -0.5, %v1045
        %v1077 = vadd.f32 %v1076, 1.0
        %v1078 = vmul.f32 %v1077, %v1045
        %v1079 = vand.u32 2147483647, %v1045
        %vm1080 = vcmp.lt.f32.partialorder %v1079, 0.0004427343
        %v1081 = vsel %vm1080, %v1078, %v1075
        %v1082 = vadd.f32 %v1018, %v1054
        %v1083 = vadd.f32 %v1019, %v1063
        %v1084 = vadd.f32 %v1020, %v1072
        %v1085 = vadd.f32 %v1021, %v1081
        %v1086 = vsel %vm1022, %v1026, %v1082
        %v1087 = vsel %vm1023, %v1027, %v1083
        %v1088 = vsel %vm1024, %v1028, %v1084
        %v1089 = vsel %vm1025, %v1029, %v1085
        %1090 = vst.msk [vmem:[#allocation7] sm:$0xff] %vm778, %v1086
        %1091 = vst.msk [vmem:[#allocation7 + $0x8] sm:$0xff] %vm778, %v1087
        %1092 = vst.msk [vmem:[#allocation7 + $0x10] sm:$0xff] %vm778, %v1088
        %1093 = vst.msk [vmem:[#allocation7 + $0x18] sm:$0xff] %vm778, %v1089
        %v1094 = vmul.f32 %v1086, %v692
        %v1095 = vmul.f32 %v1087, %v693
        %v1096 = vmul.f32 %v1088, %v694
        %v1097 = vmul.f32 %v1089, %v695
        %1098 = vst.msk [vmem:[#allocation8] sm:$0xff] %vm778, %v1094
        %1099 = vst.msk [vmem:[#allocation8 + $0x8] sm:$0xff] %vm778, %v1095
        %1100 = vst.msk [vmem:[#allocation8 + $0x10] sm:$0xff] %vm778, %v1096
        %1101 = vst.msk [vmem:[#allocation8 + $0x18] sm:$0xff] %vm778, %v1097
        %v1102 = vld [vmem:[#allocation15] sm:$0xff]
        %v1103 = vld [vmem:[#allocation15 + $0x8] sm:$0xff]
        %v1104 = vld [vmem:[#allocation5] sm:$0xff]
        %v1105 = vld [vmem:[#allocation5 + $0x8] sm:$0xff]
        loop: start=0, step=1, limit=4
        $region107: #{tpu_custom_call.1} parent=51 // loop_pre_header
          _
        $region108: #{tpu_custom_call.1} parent=51 // loop_header
          %s1107 = sphi 0, %s1111
          %p1108 = scmp.ge.s32.totalorder %s1107, 4
          %v1112 = vphi %v1104, %v1996
          %v1113 = vphi %v1105, %v1997
        $region109: #{tpu_custom_call.1} parent=51 // loop_header_branch
          %1110 = sbr.rel (%p1108) target = $region113
        $region110: #{tpu_custom_call.1} parent=51 // loop_body
          %s1114 = smul.u32 %s1107, 8
          %s1115 = scalar_lea.vmem [#allocation7], %s1114
          %v1116 = vld [vmem:[%s1115] sm:$0xff]
          %s1117 = scalar_lea.vmem [#allocation8], %s1114
          %v1118 = vld [vmem:[%s1117] sm:$0xff]
          %s1119 = scalar_lea.vmem [#allocation9], %s1114
          %v1120 = vld [vmem:[%s1119] sm:$0xff]
          %s1121 = scalar_lea.vmem [#allocation10], %s1114
          %v1122 = vld [vmem:[%s1121] sm:$0xff]
          %v1124 = vcombine.high %v1116, %v1116
          %v1126 = vunpack.c.l.s4 1966171168
          %v1127 = vunpack.c.0.s8 %v1126
          %v1128 = vlaneseq
          %v1129 = vshrl.u32 %v1128, 7
          %v1130 = vsub.s32 %v1127, %v1129
          %v1131 = vrot.slane %v1116, %v1130
          %v1133 = vunpack.c.l.s4 1966171168
          %v1134 = vunpack.c.0.s8 %v1133
          %v1135 = vlaneseq
          %v1136 = vshrl.u32 %v1135, 7
          %v1137 = vsub.s32 %v1134, %v1136
          %v1138 = vrot.slane %v1124, %v1137
          %v1139 = vcombine.high %v1131, %v1131
          %v1140 = vcombine.high %v1138, %v1138
          %v1142 = vunpack.c.l.s4 1966171168
          %v1143 = vunpack.c.0.s8 %v1142
          %v1144 = vlaneseq
          %v1145 = vshrl.u32 %v1144, 7
          %v1146 = vsub.s32 %v1143, %v1145
          %v1147 = vrot.slane %v1131, %v1146
          %v1149 = vunpack.c.l.s4 1966171168
          %v1150 = vunpack.c.0.s8 %v1149
          %v1151 = vlaneseq
          %v1152 = vshrl.u32 %v1151, 7
          %v1153 = vsub.s32 %v1150, %v1152
          %v1154 = vrot.slane %v1138, %v1153
          %v1156 = vunpack.c.l.s4 1966171168
          %v1157 = vunpack.c.0.s8 %v1156
          %v1158 = vlaneseq
          %v1159 = vshrl.u32 %v1158, 7
          %v1160 = vsub.s32 %v1157, %v1159
          %v1161 = vrot.slane %v1139, %v1160
          %v1163 = vunpack.c.l.s4 1966171168
          %v1164 = vunpack.c.0.s8 %v1163
          %v1165 = vlaneseq
          %v1166 = vshrl.u32 %v1165, 7
          %v1167 = vsub.s32 %v1164, %v1166
          %v1168 = vrot.slane %v1140, %v1167
          %v1169 = vcombine.high %v1147, %v1147
          %v1170 = vcombine.high %v1154, %v1154
          %v1171 = vcombine.high %v1161, %v1161
          %v1172 = vcombine.high %v1168, %v1168
          %v1173 = vlaneseq
          %v1174 = vshrl.u32 %v1173, 7
          %v1175 = vsub.s32 0, %v1174
          %v1176 = vrot.slane %v1147, %v1175
          %v1177 = vlaneseq
          %v1178 = vshrl.u32 %v1177, 7
          %v1179 = vsub.s32 0, %v1178
          %v1180 = vrot.slane %v1161, %v1179
          %v1181 = vlaneseq
          %v1182 = vshrl.u32 %v1181, 7
          %v1183 = vsub.s32 0, %v1182
          %v1184 = vrot.slane %v1169, %v1183
          %v1185 = vlaneseq
          %v1186 = vshrl.u32 %v1185, 7
          %v1187 = vsub.s32 0, %v1186
          %v1188 = vrot.slane %v1171, %v1187
          %v1189 = vlaneseq
          %v1190 = vshrl.u32 %v1189, 7
          %v1191 = vsub.s32 0, %v1190
          %v1192 = vrot.slane %v1154, %v1191
          %v1193 = vlaneseq
          %v1194 = vshrl.u32 %v1193, 7
          %v1195 = vsub.s32 0, %v1194
          %v1196 = vrot.slane %v1168, %v1195
          %v1197 = vlaneseq
          %v1198 = vshrl.u32 %v1197, 7
          %v1199 = vsub.s32 0, %v1198
          %v1200 = vrot.slane %v1170, %v1199
          %v1201 = vlaneseq
          %v1202 = vshrl.u32 %v1201, 7
          %v1203 = vsub.s32 0, %v1202
          %v1204 = vrot.slane %v1172, %v1203
          %v1213 = vmul.f32 %v1176, %v1102
          %v1214 = vmul.f32 %v1176, %v1103
          %v1215 = vmul.f32 %v1180, %v1102
          %v1216 = vmul.f32 %v1180, %v1103
          %v1217 = vmul.f32 %v1184, %v1102
          %v1218 = vmul.f32 %v1184, %v1103
          %v1219 = vmul.f32 %v1188, %v1102
          %v1220 = vmul.f32 %v1188, %v1103
          %v1221 = vmul.f32 %v1192, %v1102
          %v1222 = vmul.f32 %v1192, %v1103
          %v1223 = vmul.f32 %v1196, %v1102
          %v1224 = vmul.f32 %v1196, %v1103
          %v1225 = vmul.f32 %v1200, %v1102
          %v1226 = vmul.f32 %v1200, %v1103
          %v1227 = vmul.f32 %v1204, %v1102
          %v1228 = vmul.f32 %v1204, %v1103
          %v1229 = vmul.f32 %v1213, 1.442695
          %v1230 = vpow.pop %v1229
          %v1231 = vmul.f32 %v1214, 1.442695
          %v1232 = vpow.pop %v1231
          %v1233 = vmul.f32 %v1215, 1.442695
          %v1234 = vpow.pop %v1233
          %v1235 = vmul.f32 %v1216, 1.442695
          %v1236 = vpow.pop %v1235
          %v1237 = vmul.f32 %v1217, 1.442695
          %v1238 = vpow.pop %v1237
          %v1239 = vmul.f32 %v1218, 1.442695
          %v1240 = vpow.pop %v1239
          %v1241 = vmul.f32 %v1219, 1.442695
          %v1242 = vpow.pop %v1241
          %v1243 = vmul.f32 %v1220, 1.442695
          %v1244 = vpow.pop %v1243
          %v1245 = vmul.f32 %v1221, 1.442695
          %v1246 = vpow.pop %v1245
          %v1247 = vmul.f32 %v1222, 1.442695
          %v1248 = vpow.pop %v1247
          %v1249 = vmul.f32 %v1223, 1.442695
          %v1250 = vpow.pop %v1249
          %v1251 = vmul.f32 %v1224, 1.442695
          %v1252 = vpow.pop %v1251
          %v1253 = vmul.f32 %v1225, 1.442695
          %v1254 = vpow.pop %v1253
          %v1255 = vmul.f32 %v1226, 1.442695
          %v1256 = vpow.pop %v1255
          %v1257 = vmul.f32 %v1227, 1.442695
          %v1258 = vpow.pop %v1257
          %v1259 = vmul.f32 %v1228, 1.442695
          %v1260 = vpow.pop %v1259
          %v1261 = vlaneseq
          %v1262 = vshrl.u32 %v1261, 7
          %v1263 = vsub.s32 0, %v1262
          %v1264 = vrot.slane %v1120, %v1263
          %1266 = vbcast.lane.b32.xlu0 %v1264, 256
          %v1267 = vpop.permute.xlu0 %1266
          %s1269 = sor.u32 256, 8
          %1270 = vbcast.lane.b32.xlu0 %v1264, %s1269
          %v1271 = vpop.permute.xlu0 %1270
          %v1272 = vlaneseq
          %v1273 = vshrl.u32 %v1272, 7
          %v1274 = vsub.s32 1, %v1273
          %v1275 = vrot.slane %v1120, %v1274
          %1277 = vbcast.lane.b32.xlu0 %v1275, 256
          %v1278 = vpop.permute.xlu0 %1277
          %s1280 = sor.u32 256, 8
          %1281 = vbcast.lane.b32.xlu0 %v1275, %s1280
          %v1282 = vpop.permute.xlu0 %1281
          %v1283 = vlaneseq
          %v1284 = vshrl.u32 %v1283, 7
          %v1285 = vsub.s32 2, %v1284
          %v1286 = vrot.slane %v1120, %v1285
          %1288 = vbcast.lane.b32.xlu0 %v1286, 256
          %v1289 = vpop.permute.xlu0 %1288
          %s1291 = sor.u32 256, 8
          %1292 = vbcast.lane.b32.xlu0 %v1286, %s1291
          %v1293 = vpop.permute.xlu0 %1292
          %v1294 = vlaneseq
          %v1295 = vshrl.u32 %v1294, 7
          %v1296 = vsub.s32 3, %v1295
          %v1297 = vrot.slane %v1120, %v1296
          %1299 = vbcast.lane.b32.xlu0 %v1297, 256
          %v1300 = vpop.permute.xlu0 %1299
          %s1302 = sor.u32 256, 8
          %1303 = vbcast.lane.b32.xlu0 %v1297, %s1302
          %v1304 = vpop.permute.xlu0 %1303
          %v1305 = vlaneseq
          %v1306 = vshrl.u32 %v1305, 7
          %v1307 = vsub.s32 4, %v1306
          %v1308 = vrot.slane %v1120, %v1307
          %1310 = vbcast.lane.b32.xlu0 %v1308, 256
          %v1311 = vpop.permute.xlu0 %1310
          %s1313 = sor.u32 256, 8
          %1314 = vbcast.lane.b32.xlu0 %v1308, %s1313
          %v1315 = vpop.permute.xlu0 %1314
          %v1316 = vlaneseq
          %v1317 = vshrl.u32 %v1316, 7
          %v1318 = vsub.s32 5, %v1317
          %v1319 = vrot.slane %v1120, %v1318
          %1321 = vbcast.lane.b32.xlu0 %v1319, 256
          %v1322 = vpop.permute.xlu0 %1321
          %s1324 = sor.u32 256, 8
          %1325 = vbcast.lane.b32.xlu0 %v1319, %s1324
          %v1326 = vpop.permute.xlu0 %1325
          %v1327 = vlaneseq
          %v1328 = vshrl.u32 %v1327, 7
          %v1329 = vsub.s32 6, %v1328
          %v1330 = vrot.slane %v1120, %v1329
          %1332 = vbcast.lane.b32.xlu0 %v1330, 256
          %v1333 = vpop.permute.xlu0 %1332
          %s1335 = sor.u32 256, 8
          %1336 = vbcast.lane.b32.xlu0 %v1330, %s1335
          %v1337 = vpop.permute.xlu0 %1336
          %v1338 = vlaneseq
          %v1339 = vshrl.u32 %v1338, 7
          %v1340 = vsub.s32 7, %v1339
          %v1341 = vrot.slane %v1120, %v1340
          %1343 = vbcast.lane.b32.xlu0 %v1341, 256
          %v1344 = vpop.permute.xlu0 %1343
          %s1346 = sor.u32 256, 8
          %1347 = vbcast.lane.b32.xlu0 %v1341, %s1346
          %v1348 = vpop.permute.xlu0 %1347
          %v1350 = vcombine.high %v1118, %v1118
          %v1352 = vunpack.c.l.s4 1966171168
          %v1353 = vunpack.c.0.s8 %v1352
          %v1354 = vlaneseq
          %v1355 = vshrl.u32 %v1354, 7
          %v1356 = vsub.s32 %v1353, %v1355
          %v1357 = vrot.slane %v1118, %v1356
          %v1359 = vunpack.c.l.s4 1966171168
          %v1360 = vunpack.c.0.s8 %v1359
          %v1361 = vlaneseq
          %v1362 = vshrl.u32 %v1361, 7
          %v1363 = vsub.s32 %v1360, %v1362
          %v1364 = vrot.slane %v1350, %v1363
          %v1365 = vcombine.high %v1357, %v1357
          %v1366 = vcombine.high %v1364, %v1364
          %v1368 = vunpack.c.l.s4 1966171168
          %v1369 = vunpack.c.0.s8 %v1368
          %v1370 = vlaneseq
          %v1371 = vshrl.u32 %v1370, 7
          %v1372 = vsub.s32 %v1369, %v1371
          %v1373 = vrot.slane %v1357, %v1372
          %v1375 = vunpack.c.l.s4 1966171168
          %v1376 = vunpack.c.0.s8 %v1375
          %v1377 = vlaneseq
          %v1378 = vshrl.u32 %v1377, 7
          %v1379 = vsub.s32 %v1376, %v1378
          %v1380 = vrot.slane %v1364, %v1379
          %v1382 = vunpack.c.l.s4 1966171168
          %v1383 = vunpack.c.0.s8 %v1382
          %v1384 = vlaneseq
          %v1385 = vshrl.u32 %v1384, 7
          %v1386 = vsub.s32 %v1383, %v1385
          %v1387 = vrot.slane %v1365, %v1386
          %v1389 = vunpack.c.l.s4 1966171168
          %v1390 = vunpack.c.0.s8 %v1389
          %v1391 = vlaneseq
          %v1392 = vshrl.u32 %v1391, 7
          %v1393 = vsub.s32 %v1390, %v1392
          %v1394 = vrot.slane %v1366, %v1393
          %v1395 = vcombine.high %v1373, %v1373
          %v1396 = vcombine.high %v1380, %v1380
          %v1397 = vcombine.high %v1387, %v1387
          %v1398 = vcombine.high %v1394, %v1394
          %v1399 = vlaneseq
          %v1400 = vshrl.u32 %v1399, 7
          %v1401 = vsub.s32 0, %v1400
          %v1402 = vrot.slane %v1373, %v1401
          %v1403 = vlaneseq
          %v1404 = vshrl.u32 %v1403, 7
          %v1405 = vsub.s32 0, %v1404
          %v1406 = vrot.slane %v1387, %v1405
          %v1407 = vlaneseq
          %v1408 = vshrl.u32 %v1407, 7
          %v1409 = vsub.s32 0, %v1408
          %v1410 = vrot.slane %v1395, %v1409
          %v1411 = vlaneseq
          %v1412 = vshrl.u32 %v1411, 7
          %v1413 = vsub.s32 0, %v1412
          %v1414 = vrot.slane %v1397, %v1413
          %v1415 = vlaneseq
          %v1416 = vshrl.u32 %v1415, 7
          %v1417 = vsub.s32 0, %v1416
          %v1418 = vrot.slane %v1380, %v1417
          %v1419 = vlaneseq
          %v1420 = vshrl.u32 %v1419, 7
          %v1421 = vsub.s32 0, %v1420
          %v1422 = vrot.slane %v1394, %v1421
          %v1423 = vlaneseq
          %v1424 = vshrl.u32 %v1423, 7
          %v1425 = vsub.s32 0, %v1424
          %v1426 = vrot.slane %v1396, %v1425
          %v1427 = vlaneseq
          %v1428 = vshrl.u32 %v1427, 7
          %v1429 = vsub.s32 0, %v1428
          %v1430 = vrot.slane %v1398, %v1429
          %v1439 = vmul.f32 %v1267, %v1402
          %v1440 = vmul.f32 %v1271, %v1402
          %v1441 = vmul.f32 %v1278, %v1406
          %v1442 = vmul.f32 %v1282, %v1406
          %v1443 = vmul.f32 %v1289, %v1410
          %v1444 = vmul.f32 %v1293, %v1410
          %v1445 = vmul.f32 %v1300, %v1414
          %v1446 = vmul.f32 %v1304, %v1414
          %v1447 = vmul.f32 %v1311, %v1418
          %v1448 = vmul.f32 %v1315, %v1418
          %v1449 = vmul.f32 %v1322, %v1422
          %v1450 = vmul.f32 %v1326, %v1422
          %v1451 = vmul.f32 %v1333, %v1426
          %v1452 = vmul.f32 %v1337, %v1426
          %v1453 = vmul.f32 %v1344, %v1430
          %v1454 = vmul.f32 %v1348, %v1430
          %v1455 = vmul.f32 %v1230, %v1112
          %v1456 = vmul.f32 %v1232, %v1113
          %v1457 = vadd.f32 %v1455, %v1439
          %v1458 = vadd.f32 %v1456, %v1440
          %v1460 = vsel %vm887, %v1122, 0
          %1462 = vmatprep.subr.mxu0 0.0
          %1463 = vmatpush1.msra.mxu0 %v1457
          %1464 = vmatprep.subr.mxu0 0.0
          %1465 = vmatpush1.msra.mxu0 %v1458
          %1466 = vmatprep.subr.mxu0 0.0
          %1467 = vmatpush1.msra.mxu0 0.0
          %1468 = vmatprep.subr.mxu0 0.0
          %1469 = vmatpush1.msra.mxu0 0.0
          %1470 = vmatprep.subr.mxu0 0.0
          %1471 = vmatpush1.msra.mxu0 0.0
          %1472 = vmatprep.subr.mxu0 0.0
          %1473 = vmatpush1.msra.mxu0 0.0
          %1474 = vmatprep.subr.mxu0 0.0
          %1475 = vmatpush1.msra.mxu0 0.0
          %1476 = vmatprep.subr.mxu0 0.0
          %1477 = vmatpush1.msra.mxu0 0.0
          %1478 = vmatprep.subr.mxu0 0.0
          %1479 = vmatpush1.msra.mxu0 0.0
          %1480 = vmatprep.subr.mxu0 0.0
          %1481 = vmatpush1.msra.mxu0 0.0
          %1482 = vmatprep.subr.mxu0 0.0
          %1483 = vmatpush1.msra.mxu0 0.0
          %1484 = vmatprep.subr.mxu0 0.0
          %1485 = vmatpush1.msra.mxu0 0.0
          %1486 = vmatprep.subr.mxu0 0.0
          %1487 = vmatpush1.msra.mxu0 0.0
          %1488 = vmatprep.subr.mxu0 0.0
          %1489 = vmatpush1.msra.mxu0 0.0
          %1490 = vmatprep.subr.mxu0 0.0
          %1491 = vmatpush1.msra.mxu0 0.0
          %1492 = vmatprep.subr.mxu0 0.0
          %1493 = vmatpush1.msra.mxu0 0.0
          %1494 = vmatprep.subr.mxu0 0.0
          %1495 = vmatpush1.msra.mxu0 0.0
          %1496 = vmatprep.subr.mxu0 0.0
          %1497 = vmatpush1.msra.mxu0 0.0
          %1498 = vmatprep.subr.mxu0 0.0
          %1499 = vmatpush1.msra.mxu0 0.0
          %1500 = vmatprep.subr.mxu0 0.0
          %1501 = vmatpush1.msra.mxu0 0.0
          %1502 = vmatprep.subr.mxu0 0.0
          %1503 = vmatpush1.msra.mxu0 0.0
          %1504 = vmatprep.subr.mxu0 0.0
          %1505 = vmatpush1.msra.mxu0 0.0
          %1506 = vmatprep.subr.mxu0 0.0
          %1507 = vmatpush1.msra.mxu0 0.0
          %1508 = vmatprep.subr.mxu0 0.0
          %1509 = vmatpush1.msra.mxu0 0.0
          %1510 = vmatprep.subr.mxu0 0.0
          %1511 = vmatpush1.msra.mxu0 0.0
          %1512 = vmatprep.subr.mxu0 0.0
          %1513 = vmatpush1.msra.mxu0 0.0
          %1514 = vmatprep.subr.mxu0 0.0
          %1515 = vmatpush1.msra.mxu0 0.0
          %1516 = vmatprep.subr.mxu0 0.0
          %1517 = vmatpush1.msra.mxu0 0.0
          %1518 = vmatprep.subr.mxu0 0.0
          %1519 = vmatpush1.msra.mxu0 0.0
          %1520 = vmatprep.subr.mxu0 0.0
          %1521 = vmatpush1.msra.mxu0 0.0
          %1522 = vmatprep.subr.mxu0 0.0
          %1523 = vmatpush1.msra.mxu0 0.0
          %1524 = vmatprep.subr.mxu0 0.0
          %1525 = vmatpush1.msra.mxu0 0.0
          %1526 = vmatprep.mubr.f32.mxu0 0.0
          %1527 = vmatmul.mubr.f32.gmra.mrb[0].mxu0 %v1460
          %v1528 = vpop.f32.mrb[0].mxu0
          %v1529 = vadd.f32 0.0, %v1528
          %v1530 = vpop.f32.mrb[0].mxu0
          %1531 = vdwg.mxu0
          %v1532 = vmul.f32 %v1234, %v1457
          %v1533 = vmul.f32 %v1236, %v1458
          %v1534 = vadd.f32 %v1532, %v1441
          %v1535 = vadd.f32 %v1533, %v1442
          %v1536 = vrot.slane %v1122, 1
          %v1537 = vsel %vm887, %v1536, 0
          %1539 = vmatprep.subr.mxu0 0.0
          %1540 = vmatpush1.msra.mxu0 %v1534
          %1541 = vmatprep.subr.mxu0 0.0
          %1542 = vmatpush1.msra.mxu0 %v1535
          %1543 = vmatprep.subr.mxu0 0.0
          %1544 = vmatpush1.msra.mxu0 0.0
          %1545 = vmatprep.subr.mxu0 0.0
          %1546 = vmatpush1.msra.mxu0 0.0
          %1547 = vmatprep.subr.mxu0 0.0
          %1548 = vmatpush1.msra.mxu0 0.0
          %1549 = vmatprep.subr.mxu0 0.0
          %1550 = vmatpush1.msra.mxu0 0.0
          %1551 = vmatprep.subr.mxu0 0.0
          %1552 = vmatpush1.msra.mxu0 0.0
          %1553 = vmatprep.subr.mxu0 0.0
          %1554 = vmatpush1.msra.mxu0 0.0
          %1555 = vmatprep.subr.mxu0 0.0
          %1556 = vmatpush1.msra.mxu0 0.0
          %1557 = vmatprep.subr.mxu0 0.0
          %1558 = vmatpush1.msra.mxu0 0.0
          %1559 = vmatprep.subr.mxu0 0.0
          %1560 = vmatpush1.msra.mxu0 0.0
          %1561 = vmatprep.subr.mxu0 0.0
          %1562 = vmatpush1.msra.mxu0 0.0
          %1563 = vmatprep.subr.mxu0 0.0
          %1564 = vmatpush1.msra.mxu0 0.0
          %1565 = vmatprep.subr.mxu0 0.0
          %1566 = vmatpush1.msra.mxu0 0.0
          %1567 = vmatprep.subr.mxu0 0.0
          %1568 = vmatpush1.msra.mxu0 0.0
          %1569 = vmatprep.subr.mxu0 0.0
          %1570 = vmatpush1.msra.mxu0 0.0
          %1571 = vmatprep.subr.mxu0 0.0
          %1572 = vmatpush1.msra.mxu0 0.0
          %1573 = vmatprep.subr.mxu0 0.0
          %1574 = vmatpush1.msra.mxu0 0.0
          %1575 = vmatprep.subr.mxu0 0.0
          %1576 = vmatpush1.msra.mxu0 0.0
          %1577 = vmatprep.subr.mxu0 0.0
          %1578 = vmatpush1.msra.mxu0 0.0
          %1579 = vmatprep.subr.mxu0 0.0
          %1580 = vmatpush1.msra.mxu0 0.0
          %1581 = vmatprep.subr.mxu0 0.0
          %1582 = vmatpush1.msra.mxu0 0.0
          %1583 = vmatprep.subr.mxu0 0.0
          %1584 = vmatpush1.msra.mxu0 0.0
          %1585 = vmatprep.subr.mxu0 0.0
          %1586 = vmatpush1.msra.mxu0 0.0
          %1587 = vmatprep.subr.mxu0 0.0
          %1588 = vmatpush1.msra.mxu0 0.0
          %1589 = vmatprep.subr.mxu0 0.0
          %1590 = vmatpush1.msra.mxu0 0.0
          %1591 = vmatprep.subr.mxu0 0.0
          %1592 = vmatpush1.msra.mxu0 0.0
          %1593 = vmatprep.subr.mxu0 0.0
          %1594 = vmatpush1.msra.mxu0 0.0
          %1595 = vmatprep.subr.mxu0 0.0
          %1596 = vmatpush1.msra.mxu0 0.0
          %1597 = vmatprep.subr.mxu0 0.0
          %1598 = vmatpush1.msra.mxu0 0.0
          %1599 = vmatprep.subr.mxu0 0.0
          %1600 = vmatpush1.msra.mxu0 0.0
          %1601 = vmatprep.subr.mxu0 0.0
          %1602 = vmatpush1.msra.mxu0 0.0
          %1603 = vmatprep.mubr.f32.mxu0 0.0
          %1604 = vmatmul.mubr.f32.gmra.mrb[0].mxu0 %v1537
          %v1605 = vpop.f32.mrb[0].mxu0
          %v1606 = vadd.f32 0.0, %v1605
          %v1607 = vpop.f32.mrb[0].mxu0
          %1608 = vdwg.mxu0
          %v1609 = vmul.f32 %v1238, %v1534
          %v1610 = vmul.f32 %v1240, %v1535
          %v1611 = vadd.f32 %v1609, %v1443
          %v1612 = vadd.f32 %v1610, %v1444
          %v1613 = vrot.slane %v1122, 2
          %v1614 = vsel %vm887, %v1613, 0
          %1616 = vmatprep.subr.mxu0 0.0
          %1617 = vmatpush1.msra.mxu0 %v1611
          %1618 = vmatprep.subr.mxu0 0.0
          %1619 = vmatpush1.msra.mxu0 %v1612
          %1620 = vmatprep.subr.mxu0 0.0
          %1621 = vmatpush1.msra.mxu0 0.0
          %1622 = vmatprep.subr.mxu0 0.0
          %1623 = vmatpush1.msra.mxu0 0.0
          %1624 = vmatprep.subr.mxu0 0.0
          %1625 = vmatpush1.msra.mxu0 0.0
          %1626 = vmatprep.subr.mxu0 0.0
          %1627 = vmatpush1.msra.mxu0 0.0
          %1628 = vmatprep.subr.mxu0 0.0
          %1629 = vmatpush1.msra.mxu0 0.0
          %1630 = vmatprep.subr.mxu0 0.0
          %1631 = vmatpush1.msra.mxu0 0.0
          %1632 = vmatprep.subr.mxu0 0.0
          %1633 = vmatpush1.msra.mxu0 0.0
          %1634 = vmatprep.subr.mxu0 0.0
          %1635 = vmatpush1.msra.mxu0 0.0
          %1636 = vmatprep.subr.mxu0 0.0
          %1637 = vmatpush1.msra.mxu0 0.0
          %1638 = vmatprep.subr.mxu0 0.0
          %1639 = vmatpush1.msra.mxu0 0.0
          %1640 = vmatprep.subr.mxu0 0.0
          %1641 = vmatpush1.msra.mxu0 0.0
          %1642 = vmatprep.subr.mxu0 0.0
          %1643 = vmatpush1.msra.mxu0 0.0
          %1644 = vmatprep.subr.mxu0 0.0
          %1645 = vmatpush1.msra.mxu0 0.0
          %1646 = vmatprep.subr.mxu0 0.0
          %1647 = vmatpush1.msra.mxu0 0.0
          %1648 = vmatprep.subr.mxu0 0.0
          %1649 = vmatpush1.msra.mxu0 0.0
          %1650 = vmatprep.subr.mxu0 0.0
          %1651 = vmatpush1.msra.mxu0 0.0
          %1652 = vmatprep.subr.mxu0 0.0
          %1653 = vmatpush1.msra.mxu0 0.0
          %1654 = vmatprep.subr.mxu0 0.0
          %1655 = vmatpush1.msra.mxu0 0.0
          %1656 = vmatprep.subr.mxu0 0.0
          %1657 = vmatpush1.msra.mxu0 0.0
          %1658 = vmatprep.subr.mxu0 0.0
          %1659 = vmatpush1.msra.mxu0 0.0
          %1660 = vmatprep.subr.mxu0 0.0
          %1661 = vmatpush1.msra.mxu0 0.0
          %1662 = vmatprep.subr.mxu0 0.0
          %1663 = vmatpush1.msra.mxu0 0.0
          %1664 = vmatprep.subr.mxu0 0.0
          %1665 = vmatpush1.msra.mxu0 0.0
          %1666 = vmatprep.subr.mxu0 0.0
          %1667 = vmatpush1.msra.mxu0 0.0
          %1668 = vmatprep.subr.mxu0 0.0
          %1669 = vmatpush1.msra.mxu0 0.0
          %1670 = vmatprep.subr.mxu0 0.0
          %1671 = vmatpush1.msra.mxu0 0.0
          %1672 = vmatprep.subr.mxu0 0.0
          %1673 = vmatpush1.msra.mxu0 0.0
          %1674 = vmatprep.subr.mxu0 0.0
          %1675 = vmatpush1.msra.mxu0 0.0
          %1676 = vmatprep.subr.mxu0 0.0
          %1677 = vmatpush1.msra.mxu0 0.0
          %1678 = vmatprep.subr.mxu0 0.0
          %1679 = vmatpush1.msra.mxu0 0.0
          %1680 = vmatprep.mubr.f32.mxu0 0.0
          %1681 = vmatmul.mubr.f32.gmra.mrb[0].mxu0 %v1614
          %v1682 = vpop.f32.mrb[0].mxu0
          %v1683 = vadd.f32 0.0, %v1682
          %v1684 = vpop.f32.mrb[0].mxu0
          %1685 = vdwg.mxu0
          %v1686 = vmul.f32 %v1242, %v1611
          %v1687 = vmul.f32 %v1244, %v1612
          %v1688 = vadd.f32 %v1686, %v1445
          %v1689 = vadd.f32 %v1687, %v1446
          %v1690 = vrot.slane %v1122, 3
          %v1691 = vsel %vm887, %v1690, 0
          %1693 = vmatprep.subr.mxu0 0.0
          %1694 = vmatpush1.msra.mxu0 %v1688
          %1695 = vmatprep.subr.mxu0 0.0
          %1696 = vmatpush1.msra.mxu0 %v1689
          %1697 = vmatprep.subr.mxu0 0.0
          %1698 = vmatpush1.msra.mxu0 0.0
          %1699 = vmatprep.subr.mxu0 0.0
          %1700 = vmatpush1.msra.mxu0 0.0
          %1701 = vmatprep.subr.mxu0 0.0
          %1702 = vmatpush1.msra.mxu0 0.0
          %1703 = vmatprep.subr.mxu0 0.0
          %1704 = vmatpush1.msra.mxu0 0.0
          %1705 = vmatprep.subr.mxu0 0.0
          %1706 = vmatpush1.msra.mxu0 0.0
          %1707 = vmatprep.subr.mxu0 0.0
          %1708 = vmatpush1.msra.mxu0 0.0
          %1709 = vmatprep.subr.mxu0 0.0
          %1710 = vmatpush1.msra.mxu0 0.0
          %1711 = vmatprep.subr.mxu0 0.0
          %1712 = vmatpush1.msra.mxu0 0.0
          %1713 = vmatprep.subr.mxu0 0.0
          %1714 = vmatpush1.msra.mxu0 0.0
          %1715 = vmatprep.subr.mxu0 0.0
          %1716 = vmatpush1.msra.mxu0 0.0
          %1717 = vmatprep.subr.mxu0 0.0
          %1718 = vmatpush1.msra.mxu0 0.0
          %1719 = vmatprep.subr.mxu0 0.0
          %1720 = vmatpush1.msra.mxu0 0.0
          %1721 = vmatprep.subr.mxu0 0.0
          %1722 = vmatpush1.msra.mxu0 0.0
          %1723 = vmatprep.subr.mxu0 0.0
          %1724 = vmatpush1.msra.mxu0 0.0
          %1725 = vmatprep.subr.mxu0 0.0
          %1726 = vmatpush1.msra.mxu0 0.0
          %1727 = vmatprep.subr.mxu0 0.0
          %1728 = vmatpush1.msra.mxu0 0.0
          %1729 = vmatprep.subr.mxu0 0.0
          %1730 = vmatpush1.msra.mxu0 0.0
          %1731 = vmatprep.subr.mxu0 0.0
          %1732 = vmatpush1.msra.mxu0 0.0
          %1733 = vmatprep.subr.mxu0 0.0
          %1734 = vmatpush1.msra.mxu0 0.0
          %1735 = vmatprep.subr.mxu0 0.0
          %1736 = vmatpush1.msra.mxu0 0.0
          %1737 = vmatprep.subr.mxu0 0.0
          %1738 = vmatpush1.msra.mxu0 0.0
          %1739 = vmatprep.subr.mxu0 0.0
          %1740 = vmatpush1.msra.mxu0 0.0
          %1741 = vmatprep.subr.mxu0 0.0
          %1742 = vmatpush1.msra.mxu0 0.0
          %1743 = vmatprep.subr.mxu0 0.0
          %1744 = vmatpush1.msra.mxu0 0.0
          %1745 = vmatprep.subr.mxu0 0.0
          %1746 = vmatpush1.msra.mxu0 0.0
          %1747 = vmatprep.subr.mxu0 0.0
          %1748 = vmatpush1.msra.mxu0 0.0
          %1749 = vmatprep.subr.mxu0 0.0
          %1750 = vmatpush1.msra.mxu0 0.0
          %1751 = vmatprep.subr.mxu0 0.0
          %1752 = vmatpush1.msra.mxu0 0.0
          %1753 = vmatprep.subr.mxu0 0.0
          %1754 = vmatpush1.msra.mxu0 0.0
          %1755 = vmatprep.subr.mxu0 0.0
          %1756 = vmatpush1.msra.mxu0 0.0
          %1757 = vmatprep.mubr.f32.mxu0 0.0
          %1758 = vmatmul.mubr.f32.gmra.mrb[0].mxu0 %v1691
          %v1759 = vpop.f32.mrb[0].mxu0
          %v1760 = vadd.f32 0.0, %v1759
          %v1761 = vpop.f32.mrb[0].mxu0
          %1762 = vdwg.mxu0
          %v1763 = vmul.f32 %v1246, %v1688
          %v1764 = vmul.f32 %v1248, %v1689
          %v1765 = vadd.f32 %v1763, %v1447
          %v1766 = vadd.f32 %v1764, %v1448
          %v1767 = vrot.slane %v1122, 4
          %v1768 = vsel %vm887, %v1767, 0
          %1770 = vmatprep.subr.mxu0 0.0
          %1771 = vmatpush1.msra.mxu0 %v1765
          %1772 = vmatprep.subr.mxu0 0.0
          %1773 = vmatpush1.msra.mxu0 %v1766
          %1774 = vmatprep.subr.mxu0 0.0
          %1775 = vmatpush1.msra.mxu0 0.0
          %1776 = vmatprep.subr.mxu0 0.0
          %1777 = vmatpush1.msra.mxu0 0.0
          %1778 = vmatprep.subr.mxu0 0.0
          %1779 = vmatpush1.msra.mxu0 0.0
          %1780 = vmatprep.subr.mxu0 0.0
          %1781 = vmatpush1.msra.mxu0 0.0
          %1782 = vmatprep.subr.mxu0 0.0
          %1783 = vmatpush1.msra.mxu0 0.0
          %1784 = vmatprep.subr.mxu0 0.0
          %1785 = vmatpush1.msra.mxu0 0.0
          %1786 = vmatprep.subr.mxu0 0.0
          %1787 = vmatpush1.msra.mxu0 0.0
          %1788 = vmatprep.subr.mxu0 0.0
          %1789 = vmatpush1.msra.mxu0 0.0
          %1790 = vmatprep.subr.mxu0 0.0
          %1791 = vmatpush1.msra.mxu0 0.0
          %1792 = vmatprep.subr.mxu0 0.0
          %1793 = vmatpush1.msra.mxu0 0.0
          %1794 = vmatprep.subr.mxu0 0.0
          %1795 = vmatpush1.msra.mxu0 0.0
          %1796 = vmatprep.subr.mxu0 0.0
          %1797 = vmatpush1.msra.mxu0 0.0
          %1798 = vmatprep.subr.mxu0 0.0
          %1799 = vmatpush1.msra.mxu0 0.0
          %1800 = vmatprep.subr.mxu0 0.0
          %1801 = vmatpush1.msra.mxu0 0.0
          %1802 = vmatprep.subr.mxu0 0.0
          %1803 = vmatpush1.msra.mxu0 0.0
          %1804 = vmatprep.subr.mxu0 0.0
          %1805 = vmatpush1.msra.mxu0 0.0
          %1806 = vmatprep.subr.mxu0 0.0
          %1807 = vmatpush1.msra.mxu0 0.0
          %1808 = vmatprep.subr.mxu0 0.0
          %1809 = vmatpush1.msra.mxu0 0.0
          %1810 = vmatprep.subr.mxu0 0.0
          %1811 = vmatpush1.msra.mxu0 0.0
          %1812 = vmatprep.subr.mxu0 0.0
          %1813 = vmatpush1.msra.mxu0 0.0
          %1814 = vmatprep.subr.mxu0 0.0
          %1815 = vmatpush1.msra.mxu0 0.0
          %1816 = vmatprep.subr.mxu0 0.0
          %1817 = vmatpush1.msra.mxu0 0.0
          %1818 = vmatprep.subr.mxu0 0.0
          %1819 = vmatpush1.msra.mxu0 0.0
          %1820 = vmatprep.subr.mxu0 0.0
          %1821 = vmatpush1.msra.mxu0 0.0
          %1822 = vmatprep.subr.mxu0 0.0
          %1823 = vmatpush1.msra.mxu0 0.0
          %1824 = vmatprep.subr.mxu0 0.0
          %1825 = vmatpush1.msra.mxu0 0.0
          %1826 = vmatprep.subr.mxu0 0.0
          %1827 = vmatpush1.msra.mxu0 0.0
          %1828 = vmatprep.subr.mxu0 0.0
          %1829 = vmatpush1.msra.mxu0 0.0
          %1830 = vmatprep.subr.mxu0 0.0
          %1831 = vmatpush1.msra.mxu0 0.0
          %1832 = vmatprep.subr.mxu0 0.0
          %1833 = vmatpush1.msra.mxu0 0.0
          %1834 = vmatprep.mubr.f32.mxu0 0.0
          %1835 = vmatmul.mubr.f32.gmra.mrb[0].mxu0 %v1768
          %v1836 = vpop.f32.mrb[0].mxu0
          %v1837 = vadd.f32 0.0, %v1836
          %v1838 = vpop.f32.mrb[0].mxu0
          %1839 = vdwg.mxu0
          %v1840 = vmul.f32 %v1250, %v1765
          %v1841 = vmul.f32 %v1252, %v1766
          %v1842 = vadd.f32 %v1840, %v1449
          %v1843 = vadd.f32 %v1841, %v1450
          %v1844 = vrot.slane %v1122, 5
          %v1845 = vsel %vm887, %v1844, 0
          %1847 = vmatprep.subr.mxu0 0.0
          %1848 = vmatpush1.msra.mxu0 %v1842
          %1849 = vmatprep.subr.mxu0 0.0
          %1850 = vmatpush1.msra.mxu0 %v1843
          %1851 = vmatprep.subr.mxu0 0.0
          %1852 = vmatpush1.msra.mxu0 0.0
          %1853 = vmatprep.subr.mxu0 0.0
          %1854 = vmatpush1.msra.mxu0 0.0
          %1855 = vmatprep.subr.mxu0 0.0
          %1856 = vmatpush1.msra.mxu0 0.0
          %1857 = vmatprep.subr.mxu0 0.0
          %1858 = vmatpush1.msra.mxu0 0.0
          %1859 = vmatprep.subr.mxu0 0.0
          %1860 = vmatpush1.msra.mxu0 0.0
          %1861 = vmatprep.subr.mxu0 0.0
          %1862 = vmatpush1.msra.mxu0 0.0
          %1863 = vmatprep.subr.mxu0 0.0
          %1864 = vmatpush1.msra.mxu0 0.0
          %1865 = vmatprep.subr.mxu0 0.0
          %1866 = vmatpush1.msra.mxu0 0.0
          %1867 = vmatprep.subr.mxu0 0.0
          %1868 = vmatpush1.msra.mxu0 0.0
          %1869 = vmatprep.subr.mxu0 0.0
          %1870 = vmatpush1.msra.mxu0 0.0
          %1871 = vmatprep.subr.mxu0 0.0
          %1872 = vmatpush1.msra.mxu0 0.0
          %1873 = vmatprep.subr.mxu0 0.0
          %1874 = vmatpush1.msra.mxu0 0.0
          %1875 = vmatprep.subr.mxu0 0.0
          %1876 = vmatpush1.msra.mxu0 0.0
          %1877 = vmatprep.subr.mxu0 0.0
          %1878 = vmatpush1.msra.mxu0 0.0
          %1879 = vmatprep.subr.mxu0 0.0
          %1880 = vmatpush1.msra.mxu0 0.0
          %1881 = vmatprep.subr.mxu0 0.0
          %1882 = vmatpush1.msra.mxu0 0.0
          %1883 = vmatprep.subr.mxu0 0.0
          %1884 = vmatpush1.msra.mxu0 0.0
          %1885 = vmatprep.subr.mxu0 0.0
          %1886 = vmatpush1.msra.mxu0 0.0
          %1887 = vmatprep.subr.mxu0 0.0
          %1888 = vmatpush1.msra.mxu0 0.0
          %1889 = vmatprep.subr.mxu0 0.0
          %1890 = vmatpush1.msra.mxu0 0.0
          %1891 = vmatprep.subr.mxu0 0.0
          %1892 = vmatpush1.msra.mxu0 0.0
          %1893 = vmatprep.subr.mxu0 0.0
          %1894 = vmatpush1.msra.mxu0 0.0
          %1895 = vmatprep.subr.mxu0 0.0
          %1896 = vmatpush1.msra.mxu0 0.0
          %1897 = vmatprep.subr.mxu0 0.0
          %1898 = vmatpush1.msra.mxu0 0.0
          %1899 = vmatprep.subr.mxu0 0.0
          %1900 = vmatpush1.msra.mxu0 0.0
          %1901 = vmatprep.subr.mxu0 0.0
          %1902 = vmatpush1.msra.mxu0 0.0
          %1903 = vmatprep.subr.mxu0 0.0
          %1904 = vmatpush1.msra.mxu0 0.0
          %1905 = vmatprep.subr.mxu0 0.0
          %1906 = vmatpush1.msra.mxu0 0.0
          %1907 = vmatprep.subr.mxu0 0.0
          %1908 = vmatpush1.msra.mxu0 0.0
          %1909 = vmatprep.subr.mxu0 0.0
          %1910 = vmatpush1.msra.mxu0 0.0
          %1911 = vmatprep.mubr.f32.mxu0 0.0
          %1912 = vmatmul.mubr.f32.gmra.mrb[0].mxu0 %v1845
          %v1913 = vpop.f32.mrb[0].mxu0
          %v1914 = vadd.f32 0.0, %v1913
          %v1915 = vpop.f32.mrb[0].mxu0
          %1916 = vdwg.mxu0
          %v1917 = vmul.f32 %v1254, %v1842
          %v1918 = vmul.f32 %v1256, %v1843
          %v1919 = vadd.f32 %v1917, %v1451
          %v1920 = vadd.f32 %v1918, %v1452
          %v1921 = vrot.slane %v1122, 6
          %v1922 = vsel %vm887, %v1921, 0
          %1924 = vmatprep.subr.mxu0 0.0
          %1925 = vmatpush1.msra.mxu0 %v1919
          %1926 = vmatprep.subr.mxu0 0.0
          %1927 = vmatpush1.msra.mxu0 %v1920
          %1928 = vmatprep.subr.mxu0 0.0
          %1929 = vmatpush1.msra.mxu0 0.0
          %1930 = vmatprep.subr.mxu0 0.0
          %1931 = vmatpush1.msra.mxu0 0.0
          %1932 = vmatprep.subr.mxu0 0.0
          %1933 = vmatpush1.msra.mxu0 0.0
          %1934 = vmatprep.subr.mxu0 0.0
          %1935 = vmatpush1.msra.mxu0 0.0
          %1936 = vmatprep.subr.mxu0 0.0
          %1937 = vmatpush1.msra.mxu0 0.0
          %1938 = vmatprep.subr.mxu0 0.0
          %1939 = vmatpush1.msra.mxu0 0.0
          %1940 = vmatprep.subr.mxu0 0.0
          %1941 = vmatpush1.msra.mxu0 0.0
          %1942 = vmatprep.subr.mxu0 0.0
          %1943 = vmatpush1.msra.mxu0 0.0
          %1944 = vmatprep.subr.mxu0 0.0
          %1945 = vmatpush1.msra.mxu0 0.0
          %1946 = vmatprep.subr.mxu0 0.0
          %1947 = vmatpush1.msra.mxu0 0.0
          %1948 = vmatprep.subr.mxu0 0.0
          %1949 = vmatpush1.msra.mxu0 0.0
          %1950 = vmatprep.subr.mxu0 0.0
          %1951 = vmatpush1.msra.mxu0 0.0
          %1952 = vmatprep.subr.mxu0 0.0
          %1953 = vmatpush1.msra.mxu0 0.0
          %1954 = vmatprep.subr.mxu0 0.0
          %1955 = vmatpush1.msra.mxu0 0.0
          %1956 = vmatprep.subr.mxu0 0.0
          %1957 = vmatpush1.msra.mxu0 0.0
          %1958 = vmatprep.subr.mxu0 0.0
          %1959 = vmatpush1.msra.mxu0 0.0
          %1960 = vmatprep.subr.mxu0 0.0
          %1961 = vmatpush1.msra.mxu0 0.0
          %1962 = vmatprep.subr.mxu0 0.0
          %1963 = vmatpush1.msra.mxu0 0.0
          %1964 = vmatprep.subr.mxu0 0.0
          %1965 = vmatpush1.msra.mxu0 0.0
          %1966 = vmatprep.subr.mxu0 0.0
          %1967 = vmatpush1.msra.mxu0 0.0
          %1968 = vmatprep.subr.mxu0 0.0
          %1969 = vmatpush1.msra.mxu0 0.0
          %1970 = vmatprep.subr.mxu0 0.0
          %1971 = vmatpush1.msra.mxu0 0.0
          %1972 = vmatprep.subr.mxu0 0.0
          %1973 = vmatpush1.msra.mxu0 0.0
          %1974 = vmatprep.subr.mxu0 0.0
          %1975 = vmatpush1.msra.mxu0 0.0
          %1976 = vmatprep.subr.mxu0 0.0
          %1977 = vmatpush1.msra.mxu0 0.0
          %1978 = vmatprep.subr.mxu0 0.0
          %1979 = vmatpush1.msra.mxu0 0.0
          %1980 = vmatprep.subr.mxu0 0.0
          %1981 = vmatpush1.msra.mxu0 0.0
          %1982 = vmatprep.subr.mxu0 0.0
          %1983 = vmatpush1.msra.mxu0 0.0
          %1984 = vmatprep.subr.mxu0 0.0
          %1985 = vmatpush1.msra.mxu0 0.0
          %1986 = vmatprep.subr.mxu0 0.0
          %1987 = vmatpush1.msra.mxu0 0.0
          %1988 = vmatprep.mubr.f32.mxu0 0.0
          %1989 = vmatmul.mubr.f32.gmra.mrb[0].mxu0 %v1922
          %v1990 = vpop.f32.mrb[0].mxu0
          %v1991 = vadd.f32 0.0, %v1990
          %v1992 = vpop.f32.mrb[0].mxu0
          %1993 = vdwg.mxu0
          %v1994 = vmul.f32 %v1258, %v1919
          %v1995 = vmul.f32 %v1260, %v1920
          %v1996 = vadd.f32 %v1994, %v1453
          %v1997 = vadd.f32 %v1995, %v1454
          %v1998 = vrot.slane %v1122, 7
          %v1999 = vsel %vm887, %v1998, 0
          %2001 = vmatprep.subr.mxu0 0.0
          %2002 = vmatpush1.msra.mxu0 %v1996
          %2003 = vmatprep.subr.mxu0 0.0
          %2004 = vmatpush1.msra.mxu0 %v1997
          %2005 = vmatprep.subr.mxu0 0.0
          %2006 = vmatpush1.msra.mxu0 0.0
          %2007 = vmatprep.subr.mxu0 0.0
          %2008 = vmatpush1.msra.mxu0 0.0
          %2009 = vmatprep.subr.mxu0 0.0
          %2010 = vmatpush1.msra.mxu0 0.0
          %2011 = vmatprep.subr.mxu0 0.0
          %2012 = vmatpush1.msra.mxu0 0.0
          %2013 = vmatprep.subr.mxu0 0.0
          %2014 = vmatpush1.msra.mxu0 0.0
          %2015 = vmatprep.subr.mxu0 0.0
          %2016 = vmatpush1.msra.mxu0 0.0
          %2017 = vmatprep.subr.mxu0 0.0
          %2018 = vmatpush1.msra.mxu0 0.0
          %2019 = vmatprep.subr.mxu0 0.0
          %2020 = vmatpush1.msra.mxu0 0.0
          %2021 = vmatprep.subr.mxu0 0.0
          %2022 = vmatpush1.msra.mxu0 0.0
          %2023 = vmatprep.subr.mxu0 0.0
          %2024 = vmatpush1.msra.mxu0 0.0
          %2025 = vmatprep.subr.mxu0 0.0
          %2026 = vmatpush1.msra.mxu0 0.0
          %2027 = vmatprep.subr.mxu0 0.0
          %2028 = vmatpush1.msra.mxu0 0.0
          %2029 = vmatprep.subr.mxu0 0.0
          %2030 = vmatpush1.msra.mxu0 0.0
          %2031 = vmatprep.subr.mxu0 0.0
          %2032 = vmatpush1.msra.mxu0 0.0
          %2033 = vmatprep.subr.mxu0 0.0
          %2034 = vmatpush1.msra.mxu0 0.0
          %2035 = vmatprep.subr.mxu0 0.0
          %2036 = vmatpush1.msra.mxu0 0.0
          %2037 = vmatprep.subr.mxu0 0.0
          %2038 = vmatpush1.msra.mxu0 0.0
          %2039 = vmatprep.subr.mxu0 0.0
          %2040 = vmatpush1.msra.mxu0 0.0
          %2041 = vmatprep.subr.mxu0 0.0
          %2042 = vmatpush1.msra.mxu0 0.0
          %2043 = vmatprep.subr.mxu0 0.0
          %2044 = vmatpush1.msra.mxu0 0.0
          %2045 = vmatprep.subr.mxu0 0.0
          %2046 = vmatpush1.msra.mxu0 0.0
          %2047 = vmatprep.subr.mxu0 0.0
          %2048 = vmatpush1.msra.mxu0 0.0
          %2049 = vmatprep.subr.mxu0 0.0
          %2050 = vmatpush1.msra.mxu0 0.0
          %2051 = vmatprep.subr.mxu0 0.0
          %2052 = vmatpush1.msra.mxu0 0.0
          %2053 = vmatprep.subr.mxu0 0.0
          %2054 = vmatpush1.msra.mxu0 0.0
          %2055 = vmatprep.subr.mxu0 0.0
          %2056 = vmatpush1.msra.mxu0 0.0
          %2057 = vmatprep.subr.mxu0 0.0
          %2058 = vmatpush1.msra.mxu0 0.0
          %2059 = vmatprep.subr.mxu0 0.0
          %2060 = vmatpush1.msra.mxu0 0.0
          %2061 = vmatprep.subr.mxu0 0.0
          %2062 = vmatpush1.msra.mxu0 0.0
          %2063 = vmatprep.subr.mxu0 0.0
          %2064 = vmatpush1.msra.mxu0 0.0
          %2065 = vmatprep.mubr.f32.mxu0 0.0
          %2066 = vmatmul.mubr.f32.gmra.mrb[0].mxu0 %v1999
          %v2067 = vpop.f32.mrb[0].mxu0
          %v2068 = vadd.f32 0.0, %v2067
          %v2069 = vpop.f32.mrb[0].mxu0
          %2070 = vdwg.mxu0
          %v2072 = vrot.slane %v1606, 7
          %v2075 = vrot.slane %v1683, 6
          %v2078 = vrot.slane %v1760, 5
          %v2081 = vrot.slane %v1837, 4
          %v2084 = vrot.slane %v1914, 3
          %v2087 = vrot.slane %v1991, 2
          %v2090 = vrot.slane %v2068, 1
          %vm2092 = vcmask 1040384
          %v2093 = vsel %vm2092, %v1529, %v2072
          %vm2094 = vcmask 1041408
          %v2095 = vsel %vm2094, %v2093, %v2075
          %v2096 = vsel %vm533, %v2095, %v2078
          %vm2097 = vcmask 1043456
          %v2098 = vsel %vm2097, %v2096, %v2081
          %v2099 = vsel %vm639, %v2098, %v2084
          %v2100 = vsel %vm607, %v2099, %v2087
          %v2101 = vsel %vm575, %v2100, %v2090
          %s2102 = scalar_lea.vmem [#allocation11], %s1114
          %2103 = vst.msk [vmem:[%s2102] sm:$0xff] %vm778, %v2101
        $region111: #{tpu_custom_call.1} parent=51 // loop_footer
          %s1111 = sadd.s32 1, %s1107
        $region112: #{tpu_custom_call.1} parent=51 // loop_footer_branch
          %1106 = sbr.rel target = $region108
        $region113: #{tpu_custom_call.1} parent=51 // loop_exit
          _
        %2104 = vst.msk [vmem:[#allocation5] sm:$0xff] %vm778, %v1112
        %2105 = vst.msk [vmem:[#allocation5 + $0x8] sm:$0xff] %vm778, %v1113
        %v2106 = vld [vmem:[#allocation11] sm:$0xff]
        %v2107 = vld [vmem:[#allocation11 + $0x8] sm:$0xff]
        %v2108 = vld [vmem:[#allocation11 + $0x10] sm:$0xff]
        %v2109 = vld [vmem:[#allocation11 + $0x18] sm:$0xff]
        %v2110 = vld [vmem:[#allocation17] sm:$0x1]
        %v2112 = vlaneseq
        %v2113 = vshrl.u32 %v2112, 7
        %v2114 = vsub.s32 0, %v2113
        %v2115 = vrot.slane %v2110, %v2114
        %v2117 = vmul.f32 %v692, %v2115
        %v2118 = vmul.f32 %v693, %v2115
        %v2119 = vmul.f32 %v694, %v2115
        %v2120 = vmul.f32 %v695, %v2115
        %v2121 = vadd.f32 %v2106, %v2117
        %v2122 = vadd.f32 %v2107, %v2118
        %v2123 = vadd.f32 %v2108, %v2119
        %v2124 = vadd.f32 %v2109, %v2120
        %v2125 = vxor.u32 %v513, 2147483648
        %v2126 = vxor.u32 %v516, 2147483648
        %v2127 = vxor.u32 %v521, 2147483648
        %v2128 = vxor.u32 %v524, 2147483648
        %v2129 = vmul.f32 %v2125, 1.442695
        %v2130 = vpow.pop %v2129
        %v2131 = vmul.f32 %v2126, 1.442695
        %v2132 = vpow.pop %v2131
        %v2133 = vmul.f32 %v2127, 1.442695
        %v2134 = vpow.pop %v2133
        %v2135 = vmul.f32 %v2128, 1.442695
        %v2136 = vpow.pop %v2135
        %v2137 = vadd.f32 %v2130, 1.0
        %v2138 = vadd.f32 %v2132, 1.0
        %v2139 = vadd.f32 %v2134, 1.0
        %v2140 = vadd.f32 %v2136, 1.0
        %v2141 = vrcp.pop %v2137
        %v2142 = vmul.f32 1.0, %v2141
        %v2143 = vrcp.pop %v2138
        %v2144 = vmul.f32 1.0, %v2143
        %v2145 = vrcp.pop %v2139
        %v2146 = vmul.f32 1.0, %v2145
        %v2147 = vrcp.pop %v2140
        %v2148 = vmul.f32 1.0, %v2147
        %v2149 = vmul.f32 %v513, %v2142
        %v2150 = vmul.f32 %v516, %v2144
        %v2151 = vmul.f32 %v521, %v2146
        %v2152 = vmul.f32 %v524, %v2148
        %2157 = vrot.lane.b32.xlu0 %v2149, 64
        %v2158 = vpop.permute.xlu0 %2157
        %2159 = vrot.lane.b32.xlu0 %v2150, 64
        %v2160 = vpop.permute.xlu0 %2159
        %2161 = vrot.lane.b32.xlu0 %v2151, 64
        %v2162 = vpop.permute.xlu0 %2161
        %2163 = vrot.lane.b32.xlu0 %v2152, 64
        %v2164 = vpop.permute.xlu0 %2163
        %v2169 = vmul.f32 %v2121, %v2158
        %v2170 = vmul.f32 %v2122, %v2160
        %v2171 = vmul.f32 %v2123, %v2162
        %v2172 = vmul.f32 %v2124, %v2164
        %v2173 = vpack.c.bf16 %v2170, %v2169
        %v2174 = vpack.c.bf16 %v2172, %v2171
        %v2175 = vld [vmem:[#allocation3] sm:$0xff]
        %v2176 = vld [vmem:[#allocation3 + $0x8] sm:$0xff]
        %v2177 = vld [vmem:[#allocation3 + $0x10] sm:$0xff]
        %v2178 = vld [vmem:[#allocation3 + $0x18] sm:$0xff]
        %v2180 = vsel %vm778, %v2173, 0
        %v2183 = vsel %vm778, %v2174, 0
        %2185 = vmatprep.subr.bf16.mxu0 0
        %2186 = vmatpush1.bf16.msra.mxu0 %v2175
        %2187 = vmatprep.subr.bf16.mxu0 0
        %2188 = vmatpush1.bf16.msra.mxu0 %v2176
        %2189 = vmatprep.subr.bf16.mxu0 0
        %2190 = vmatpush1.bf16.msra.mxu0 %v2177
        %2191 = vmatprep.subr.bf16.mxu0 0
        %2192 = vmatpush1.bf16.msra.mxu0 %v2178
        %2193 = vmatprep.subr.bf16.mxu0 0
        %2194 = vmatpush1.bf16.msra.mxu0 0
        %2195 = vmatprep.subr.bf16.mxu0 0
        %2196 = vmatpush1.bf16.msra.mxu0 0
        %2197 = vmatprep.subr.bf16.mxu0 0
        %2198 = vmatpush1.bf16.msra.mxu0 0
        %2199 = vmatprep.subr.bf16.mxu0 0
        %2200 = vmatpush1.bf16.msra.mxu0 0
        %2201 = vmatprep.subr.bf16.mxu0 0
        %2202 = vmatpush1.bf16.msra.mxu0 0
        %2203 = vmatprep.subr.bf16.mxu0 0
        %2204 = vmatpush1.bf16.msra.mxu0 0
        %2205 = vmatprep.subr.bf16.mxu0 0
        %2206 = vmatpush1.bf16.msra.mxu0 0
        %2207 = vmatprep.subr.bf16.mxu0 0
        %2208 = vmatpush1.bf16.msra.mxu0 0
        %2209 = vmatprep.subr.bf16.mxu0 0
        %2210 = vmatpush1.bf16.msra.mxu0 0
        %2211 = vmatprep.subr.bf16.mxu0 0
        %2212 = vmatpush1.bf16.msra.mxu0 0
        %2213 = vmatprep.subr.bf16.mxu0 0
        %2214 = vmatpush1.bf16.msra.mxu0 0
        %2215 = vmatprep.subr.bf16.mxu0 0
        %2216 = vmatpush1.bf16.msra.mxu0 0
        %2217 = vmatprep.mubr.bf16.mxu0 0
        %2218 = vmatmul.mubr.bf16.gmra.mrb[0].mxu0 %v2180
        %v2219 = vpop.f32.mrb[0].mxu0
        %v2220 = vadd.f32 0.0, %v2219
        %v2221 = vpop.f32.mrb[0].mxu0
        %v2222 = vpop.f32.mrb[0].mxu0
        %v2223 = vadd.f32 0.0, %v2222
        %v2224 = vpop.f32.mrb[0].mxu0
        %2225 = vmatprep.mubr.bf16.mxu0 0
        %2226 = vmatmul.mubr.bf16.gmra.mrb[0].mxu0 %v2183
        %v2227 = vpop.f32.mrb[0].mxu0
        %v2228 = vadd.f32 0.0, %v2227
        %v2229 = vpop.f32.mrb[0].mxu0
        %v2230 = vpop.f32.mrb[0].mxu0
        %v2231 = vadd.f32 0.0, %v2230
        %v2232 = vpop.f32.mrb[0].mxu0
        %2233 = vdwg.mxu0
        %2234 = vst.msk [vmem:[%s365] sm:$0xff] %vm471, %v2220
        %2235 = vst.msk [vmem:[%s365 + $0x8] sm:$0xff] %vm471, %v2223
        %2236 = vst.msk [vmem:[%s365 + $0x10] sm:$0xff] %vm471, %v2228
        %2237 = vst.msk [vmem:[%s365 + $0x18] sm:$0xff] %vm471, %v2231
        %s2238 = sand.u32 %s223, 1
        %s2239 = scalar_lea.sflag [#allocation14], %s2238
        %s2240 = sand.u32 %s223, 1
        %s2241 = smul.addr %s2240, 32
        %s2242 = scalar_lea.vmem [#allocation18], %s2241
        // Predicated region
        $region114: #{tpu_custom_call.1} parent=51 // pred_check
          %p2243 = pneg %p233
        $region115: #{tpu_custom_call.1} parent=51 // pred_check_branch
          %2245 = sbr.rel (%p2243) target = $region117
        $region116: #{tpu_custom_call.1} parent=51 // pred_region
          %s2246 = smul.u32 4, %s31
          %s2248 = ssub.s32 512, 512
          %2249 = vsyncadd %s2239, %s2248
          %s2250 = smul.addr %s30, 4
          %s2251 = sadd.s32 %s2246, %s2250
          %s2252 = smul.addr %s2251, 128
          %s2253 = scalar_lea.hbm %s10, %s2252
          %s2254 = sshll.u32 %s2242, 4
          %s2255 = int_to_ptr.vmem [resolvable:$true] %s2254
          %2260 = dma.vmem_to_hbm [thread:$0]  %s2255, 512, %s2253, %s2239, 128, 128, 8
        $region117: #{tpu_custom_call.1} parent=51 // pred_fallthru
          _
      $region52: #{tpu_custom_call.1} parent=5 // pred_fallthru
        _
      %p2261 = scmp.le.s32.totalorder 2, %s21
      // Predicated region
      $region118: #{tpu_custom_call.1} parent=5 // pred_check
        %p2262 = pneg %p2261
      $region119: #{tpu_custom_call.1} parent=5 // pred_check_branch
        %2264 = sbr.rel (%p2262) target = $region121
      $region120: #{tpu_custom_call.1} parent=5 // pred_region
        %s2265 = ssub.s32 %s21, 2
        // Predicated region
        $region122: #{tpu_custom_call.1} parent=120 // pred_check
          %p2266 = pneg %p239
        $region123: #{tpu_custom_call.1} parent=120 // pred_check_branch
          %2268 = sbr.rel (%p2266) target = $region125
        $region124: #{tpu_custom_call.1} parent=120 // pred_region
          %s2269 = sand.u32 %s224, 1
          %s2270 = scalar_lea.sflag [#allocation14], %s2269
          %s2271 = sand.u32 %s224, 1
          %s2272 = smul.addr %s2271, 32
          %s2273 = scalar_lea.vmem [#allocation18], %s2272
          %2274 = dma.done %s2270, 512
        $region125: #{tpu_custom_call.1} parent=120 // pred_fallthru
          _
      $region121: #{tpu_custom_call.1} parent=5 // pred_fallthru
        _
    $region6: #{tpu_custom_call.1} parent=1 // loop_footer
      %s25 = sadd.s32 1, %s21
    $region7: #{tpu_custom_call.1} parent=1 // loop_footer_branch
      %20 = sbr.rel target = $region3
    $region8: #{tpu_custom_call.1} parent=1 // loop_exit
      _
    %2275 = vsyncpa [#allocation13], 1
    %s2276 = scalar_lea.sflag [#allocation13], 1
    %2277 = vsyncpa %s2276, 1
    %2278 = vsyncpa [#allocation16], 1
    %2279 = vsyncpa [#allocation14], 1
    %s2280 = scalar_lea.sflag [#allocation14], 1
    %2281 = vsyncpa %s2280, 1
  %2282 = vsyncmov [#allocation4]
  %s2283 = vpop.sfrf %2282
  %p2284 = scmp.eq.s32.totalorder %s2283, 0
  %p2285 = pneg %p2284
  %2287 = shalt.err (%p2285)
  %s2288 = scalar_lea.sflag [#allocation4], 1
  %2289 = vsyncmov %s2288
  %s2290 = vpop.sfrf %2289
  %p2291 = scmp.eq.s32.totalorder %s2290, 0
  %p2292 = pneg %p2291
  %2294 = shalt.err (%p2292)

</llo_original>
